<compile_context>
chip_gen: v6e
topology: v6e:2x2x1
jax: 0.10.0
libtpu: 0.0.40
codegen_flags: <defaults>
</compile_context>

<pallas_src>
from functools import lru_cache, partial

import jax
import jax.numpy as jnp
from jax import lax
from jax.experimental import pallas as pl
from jax.experimental.pallas import tpu as pltpu


def _round_up(x, m):
    return (x + m - 1) // m * m


_LANES = 128   # pad Cout to this so output stores are lane-dense
_TINY_N = 64   # below this row count, a pallas_call costs more than the matmul


@lru_cache(maxsize=1)
def _vmem_limit_and_tile():
    """Per-generation VMEM budget + row-tile size.

    v5e/v6e have 128 MiB physical VMEM -> large tiles & high scoped limit;
    v7x has only 64 MiB -> stay conservative to avoid a spill-bound regime.
    """
    vmem_bytes = 64 * 1024 * 1024
    try:
        vmem_bytes = int(
            getattr(pltpu.get_tpu_info(), "vmem_capacity_bytes", vmem_bytes)
        )
    except Exception:
        pass
    if vmem_bytes >= 96 * 1024 * 1024:        # v5e / v6e (128 MiB)
        return 100 * 1024 * 1024, 2048
    return 48 * 1024 * 1024, 1024             # v7x (64 MiB)


# ----------------------------------------------------------------------------
# Pallas kernel: one matmul over the folded (K*Cin) contraction + fused
# BatchNorm(eval) + ReLU + occupancy-mask + bf16 cast epilogue.
# ----------------------------------------------------------------------------
def _conv_bn_relu_mask_kernel(p_ref, w_ref, s_ref, b_ref, m_ref, o_ref):
    y = jnp.dot(p_ref[...], w_ref[...], preferred_element_type=jnp.float32)
    y = y * s_ref[...] + b_ref[...]           # BN (eval mode) in f32 post-matmul
    y = jnp.maximum(y, 0.0)                   # ReLU
    y = y * m_ref[...]                        # sparse-site occupancy mask (0/1)
    o_ref[...] = y.astype(o_ref.dtype)        # bf16 store (lane-dense, 128 wide)


def conv_bn_relu_pallas(patches, mask_col, weight, scale, bias,
                        *, out_dtype=jnp.bfloat16):
    """patches: (N, K*Cin) bf16; mask_col: (N, 1) f32 occupancy of OUTPUT sites;
    weight: (K*Cin, Cout) bf16; scale/bias: (1, Cout) f32 (BN eval affine).
    Returns masked relu(conv*scale+bias) of shape (N, Cout) in out_dtype."""
    N, KC = patches.shape
    Cout = weight.shape[-1]

    # Tiny deep layers: single fused XLA dot is cheaper than a kernel launch.
    if N <= _TINY_N:
        y = jnp.dot(patches, weight, preferred_element_type=jnp.float32)
        y = jnp.maximum(y * scale + bias, 0.0) * mask_col
        return y.astype(out_dtype)

    vmem_limit, n_tile = _vmem_limit_and_tile()

    # Lane-dense output: pad Cout to 128 so stores are full unmasked vregs and
    # MXU output columns are fully used; padded channels are sliced off below.
    cp = _round_up(Cout, _LANES)
    if cp != Cout:
        weight = jnp.pad(weight, ((0, 0), (0, cp - Cout)))
        scale = jnp.pad(scale, ((0, 0), (0, cp - Cout)))
        bias = jnp.pad(bias, ((0, 0), (0, cp - Cout)))

    # Row tile: multiple of 16 (bf16 sublane granule).  No full-slab jnp.pad
    # for N alignment -- ragged tail blocks are handled by Pallas boundary
    # masking; only a tiny pad when N fits inside a single tile.
    tn = min(n_tile, _round_up(N, 16))
    n_rows = N
    if tn > N:
        patches = jnp.pad(patches, ((0, tn - N), (0, 0)))
        mask_col = jnp.pad(mask_col, ((0, tn - N), (0, 0)))
        n_rows = tn
    grid_n = pl.cdiv(n_rows, tn)

    out = pl.pallas_call(
        _conv_bn_relu_mask_kernel,
        out_shape=jax.ShapeDtypeStruct((n_rows, cp), out_dtype),
        grid_spec=pltpu.PrefetchScalarGridSpec(
            num_scalar_prefetch=0,
            grid=(grid_n,),
            in_specs=[
                pl.BlockSpec((tn, KC), lambda i: (i, 0)),   # patches tile
                pl.BlockSpec((KC, cp), lambda i: (0, 0)),   # weight (resident)
                pl.BlockSpec((1, cp), lambda i: (0, 0)),    # BN scale
                pl.BlockSpec((1, cp), lambda i: (0, 0)),    # BN bias
                pl.BlockSpec((tn, 1), lambda i: (i, 0)),    # occupancy mask
            ],
            out_specs=pl.BlockSpec((tn, cp), lambda i: (i, 0)),
        ),
        compiler_params=pltpu.CompilerParams(
            dimension_semantics=("parallel",),   # pipeline + megacore sharding
            vmem_limit_bytes=vmem_limit,
        ),
    )(patches, weight, scale, bias, mask_col)
    return out[:N, :Cout]


# ----------------------------------------------------------------------------
# Glue: im2col patch extraction (pure slices, tap-major/channel-minor order
# matching weight.reshape(K*Cin, Cout)) + layer wrapper.
# ----------------------------------------------------------------------------
def _extract_patches(x, ksize, stride, padding):
    B, D, H, W, C = x.shape
    kd, kh, kw = ksize
    sd, sh, sw = stride
    pd, ph, pw = padding
    Do = (D + 2 * pd - kd) // sd + 1
    Ho = (H + 2 * ph - kh) // sh + 1
    Wo = (W + 2 * pw - kw) // sw + 1
    xp = jnp.pad(x, ((0, 0), (pd, pd), (ph, ph), (pw, pw), (0, 0)))
    slabs = []
    for dz in range(kd):
        for dy in range(kh):
            for dx in range(kw):
                s = xp[:,
                       dz:dz + (Do - 1) * sd + 1:sd,
                       dy:dy + (Ho - 1) * sh + 1:sh,
                       dx:dx + (Wo - 1) * sw + 1:sw, :]
                slabs.append(s.reshape(B * Do * Ho * Wo, C))
    return jnp.concatenate(slabs, axis=-1), (B, Do, Ho, Wo)


def sparse_conv_layer(x, mask, params, *, ksize, stride, padding, subm):
    """x: (B,D,H,W,Cin) bf16, mask: (B,D,H,W,1) f32 occupancy.
    Returns (y bf16, out_mask f32)."""
    w, scale, bias = params
    kd, kh, kw = ksize
    sd, sh, sw = stride
    pd, ph, pw = padding
    K = kd * kh * kw
    Cin = x.shape[-1]
    Cout = w.shape[-1]

    w2d = w.reshape(K * Cin, Cout).astype(jnp.bfloat16)  # BN applied post-matmul

    if subm:
        out_mask = mask                      # SubMConv3d keeps the active set
    else:
        # SparseConv3d active set: >= 1 active input in the receptive field.
        out_mask = lax.reduce_window(
            mask, 0.0, lax.max,
            window_dimensions=(1, kd, kh, kw, 1),
            window_strides=(1, sd, sh, sw, 1),
            padding=((0, 0), (pd, pd), (ph, ph), (pw, pw), (0, 0)),
        )
        out_mask = (out_mask > 0.0).astype(jnp.float32)

    patches, (B, Do, Ho, Wo) = _extract_patches(x, ksize, stride, padding)
    mask_col = out_mask.reshape(B * Do * Ho * Wo, 1)

    y = conv_bn_relu_pallas(patches, mask_col, w2d, scale, bias)
    return y.reshape(B, Do, Ho, Wo, Cout), out_mask


# ----------------------------------------------------------------------------
# Deterministic parameter init (conv weight + eval-mode BatchNorm scale/bias)
# ----------------------------------------------------------------------------
def init_block(key, cin, cout, ksize, eps=1e-3):
    kd, kh, kw = ksize
    kw_, kg, kb = jax.random.split(key, 3)
    fan_in = kd * kh * kw * cin
    w = jax.random.normal(kw_, (kd, kh, kw, cin, cout), jnp.float32) / jnp.sqrt(
        float(fan_in)
    )
    gamma = 1.0 + 0.1 * jax.random.normal(kg, (1, cout), jnp.float32)
    beta = 0.1 * jax.random.normal(kb, (1, cout), jnp.float32)
    running_mean = jnp.zeros((1, cout), jnp.float32)
    running_var = jnp.ones((1, cout), jnp.float32)
    scale = gamma / jnp.sqrt(running_var + eps)
    bias = beta - running_mean * scale
    return (w, scale, bias)


def init_params(key, input_channels):
    ks = jax.random.split(key, 12)
    k3 = (3, 3, 3)
    return {
        "conv_input": init_block(ks[0], input_channels, 16, k3),
        "conv1_0": init_block(ks[1], 16, 16, k3),
        "conv2_0": init_block(ks[2], 16, 32, k3),
        "conv2_1": init_block(ks[3], 32, 32, k3),
        "conv2_2": init_block(ks[4], 32, 32, k3),
        "conv3_0": init_block(ks[5], 32, 64, k3),
        "conv3_1": init_block(ks[6], 64, 64, k3),
        "conv3_2": init_block(ks[7], 64, 64, k3),
        "conv4_0": init_block(ks[8], 64, 64, k3),
        "conv4_1": init_block(ks[9], 64, 64, k3),
        "conv4_2": init_block(ks[10], 64, 64, k3),
        "conv_out": init_block(ks[11], 64, 128, (3, 1, 1)),
    }


# ----------------------------------------------------------------------------
# VoxelBackBone8x forward
# ----------------------------------------------------------------------------
def voxel_backbone8x(voxel_features, voxel_coords, batch_size, sparse_shape, params):
    D, H, W = sparse_shape
    C = voxel_features.shape[-1]

    # Densify the spconv SparseConvTensor (equivalent of .dense(), channel-last)
    # directly in bf16 so no later cast pass is needed.
    # TODO(synk): duplicate voxel_coords resolve to the last writer here.
    dense = jnp.zeros((batch_size, D, H, W, C), jnp.bfloat16)
    mask = jnp.zeros((batch_size, D, H, W, 1), jnp.float32)
    b, z, y, x = (voxel_coords[:, 0], voxel_coords[:, 1],
                  voxel_coords[:, 2], voxel_coords[:, 3])
    dense = dense.at[b, z, y, x].set(voxel_features.astype(jnp.bfloat16))
    mask = mask.at[b, z, y, x].set(1.0)

    k3 = (3, 3, 3)
    subm = partial(sparse_conv_layer, ksize=k3, stride=(1, 1, 1),
                   padding=(1, 1, 1), subm=True)

    # conv_input + conv1 (submanifold, subm1)
    x0, m0 = subm(dense, mask, params["conv_input"])
    x1, m1 = subm(x0, m0, params["conv1_0"])

    # conv2: strided sparse conv then 2x subm
    x2, m2 = sparse_conv_layer(x1, m1, params["conv2_0"], ksize=k3,
                               stride=(2, 2, 2), padding=(1, 1, 1), subm=False)
    x2, m2 = subm(x2, m2, params["conv2_1"])
    x2, m2 = subm(x2, m2, params["conv2_2"])

    # conv3
    x3, m3 = sparse_conv_layer(x2, m2, params["conv3_0"], ksize=k3,
                               stride=(2, 2, 2), padding=(1, 1, 1), subm=False)
    x3, m3 = subm(x3, m3, params["conv3_1"])
    x3, m3 = subm(x3, m3, params["conv3_2"])

    # conv4 (padding (0,1,1) on z,y,x)
    x4, m4 = sparse_conv_layer(x3, m3, params["conv4_0"], ksize=k3,
                               stride=(2, 2, 2), padding=(0, 1, 1), subm=False)
    x4, m4 = subm(x4, m4, params["conv4_1"])
    x4, m4 = subm(x4, m4, params["conv4_2"])

    # conv_out: kernel (3,1,1), stride (2,1,1), padding 0
    out, m_out = sparse_conv_layer(x4, m4, params["conv_out"], ksize=(3, 1, 1),
                                   stride=(2, 1, 1), padding=(0, 0, 0),
                                   subm=False)
    return out, m_out, (x1, x2, x3, x4)


# ----------------------------------------------------------------------------
if __name__ == "__main__":
    key = jax.random.PRNGKey(0)
    batch_size = 2
    input_channels = 4
    grid_size = [16, 16, 24]                              # (X, Y, Z)
    # sparse_shape = grid_size[::-1] + [1, 0, 0] = (Z+1, Y, X)
    sparse_shape = (grid_size[2] + 1, grid_size[1], grid_size[0])  # (25, 16, 16)
    num_voxels = 256

    k_feat, k_b, k_z, k_y, k_x, k_par = jax.random.split(key, 6)
    voxel_features = jax.random.normal(
        k_feat, (num_voxels, input_channels), jnp.float32
    )
    voxel_coords = jnp.stack(
        [
            jax.random.randint(k_b, (num_voxels,), 0, batch_size),
            jax.random.randint(k_z, (num_voxels,), 0, sparse_shape[0]),
            jax.random.randint(k_y, (num_voxels,), 0, sparse_shape[1]),
            jax.random.randint(k_x, (num_voxels,), 0, sparse_shape[2]),
        ],
        axis=1,
    ).astype(jnp.int32)

    params = init_params(k_par, input_channels)

    out, out_mask, feats = voxel_backbone8x(
        voxel_features, voxel_coords, batch_size, sparse_shape, params
    )
    out = jax.block_until_ready(out)

    assert out.shape == (batch_size, 1, 2, 2, 128), out.shape
    assert not bool(jnp.isnan(out).any())
    for f in feats:
        assert not bool(jnp.isnan(f).any())

    print("KERNEL_OK")
</pallas_src>

<mosaic_0001>
module attributes {stable_mosaic.version = 11 : i64} {
  func.func @_conv_bn_relu_mask_kernel(%arg0: i32, %arg1: memref<1024x108xbf16, #tpu.memory_space<vmem>>, %arg2: memref<108x128xbf16, #tpu.memory_space<vmem>>, %arg3: memref<1x128xf32, #tpu.memory_space<vmem>>, %arg4: memref<1x128xf32, #tpu.memory_space<vmem>>, %arg5: memref<1024x1xf32, #tpu.memory_space<vmem>>, %arg6: memref<1024x128xbf16, #tpu.memory_space<vmem>>) attributes {dimension_semantics = [#tpu.dimension_semantics<parallel>], iteration_bounds = array<i64: 13>, scalar_prefetch = 0 : i64, scratch_operands = 0 : i64, tpu.core_type = #tpu.core_type<tc>, window_params = [{transform_indices = @transform_0, window_bounds = array<i64: 1024, 108>}, {pipeline_mode = #tpu.pipeline_mode<synchronous>, transform_indices = @transform_1, window_bounds = array<i64: 108, 128>}, {pipeline_mode = #tpu.pipeline_mode<synchronous>, transform_indices = @transform_2, window_bounds = array<i64: 1, 128>}, {pipeline_mode = #tpu.pipeline_mode<synchronous>, transform_indices = @transform_3, window_bounds = array<i64: 1, 128>}, {transform_indices = @transform_4, window_bounds = array<i64: 1024, 1>}, {transform_indices = @transform_5, window_bounds = array<i64: 1024, 128>}]} {
    %c0 = arith.constant 0 : index
    %c0_0 = arith.constant 0 : index
    %0 = vector.load %arg1[%c0, %c0_0] : memref<1024x108xbf16, #tpu.memory_space<vmem>>, vector<1024x108xbf16>
    %c0_1 = arith.constant 0 : index
    %c0_2 = arith.constant 0 : index
    %1 = vector.load %arg2[%c0_1, %c0_2] : memref<108x128xbf16, #tpu.memory_space<vmem>>, vector<108x128xbf16>
    %cst = arith.constant dense<0.000000e+00> : vector<1024x128xf32>
    %2 = tpu.matmul %0, %1, %cst {dimension_numbers = #tpu.dot_dimension_numbers<[1], [0], [0], [1], [0, 0, 1, 1], [], []>} : vector<1024x108xbf16>, vector<108x128xbf16>, vector<1024x128xf32> -> vector<1024x128xf32>
    %c0_3 = arith.constant 0 : index
    %c0_4 = arith.constant 0 : index
    %3 = vector.load %arg3[%c0_3, %c0_4] : memref<1x128xf32, #tpu.memory_space<vmem>>, vector<1x128xf32>
    %4 = vector.broadcast %3 : vector<1x128xf32> to vector<1024x128xf32>
    %5 = arith.mulf %2, %4 : vector<1024x128xf32>
    %c0_5 = arith.constant 0 : index
    %c0_6 = arith.constant 0 : index
    %6 = vector.load %arg4[%c0_5, %c0_6] : memref<1x128xf32, #tpu.memory_space<vmem>>, vector<1x128xf32>
    %7 = vector.broadcast %6 : vector<1x128xf32> to vector<1024x128xf32>
    %8 = arith.addf %5, %7 : vector<1024x128xf32>
    %cst_7 = arith.constant 0.000000e+00 : f32
    %9 = vector.broadcast %cst_7 : f32 to vector<1024x128xf32>
    %10 = arith.maximumf %8, %9 : vector<1024x128xf32>
    %c0_8 = arith.constant 0 : index
    %c0_9 = arith.constant 0 : index
    %11 = vector.load %arg5[%c0_8, %c0_9] : memref<1024x1xf32, #tpu.memory_space<vmem>>, vector<1024x1xf32>
    %12 = vector.broadcast %11 : vector<1024x1xf32> to vector<1024x128xf32>
    %13 = arith.mulf %10, %12 : vector<1024x128xf32>
    %14 = arith.truncf %13 : vector<1024x128xf32> to vector<1024x128xbf16>
    %c0_10 = arith.constant 0 : index
    %c0_11 = arith.constant 0 : index
    %15 = vector.load %arg6[%c0_10, %c0_11] : memref<1024x128xbf16, #tpu.memory_space<vmem>>, vector<1024x128xbf16>
    tpu.vector_store %arg6[%c0_10, %c0_11], %14 {strides = array<i32>} : memref<1024x128xbf16, #tpu.memory_space<vmem>>, vector<1024x128xbf16>,
    return
  }
  func.func @transform_0(%arg0: i32) -> (i32, i32) {
    %c0_i32 = arith.constant 0 : i32
    %c0_i32_0 = arith.constant 0 : i32
    return %arg0, %c0_i32 : i32, i32
  }
  func.func @transform_1(%arg0: i32) -> (i32, i32) {
    %c0_i32 = arith.constant 0 : i32
    %c0_i32_0 = arith.constant 0 : i32
    %c0_i32_1 = arith.constant 0 : i32
    return %c0_i32, %c0_i32_0 : i32, i32
  }
  func.func @transform_2(%arg0: i32) -> (i32, i32) {
    %c0_i32 = arith.constant 0 : i32
    %c0_i32_0 = arith.constant 0 : i32
    %c0_i32_1 = arith.constant 0 : i32
    return %c0_i32, %c0_i32_0 : i32, i32
  }
  func.func @transform_3(%arg0: i32) -> (i32, i32) {
    %c0_i32 = arith.constant 0 : i32
    %c0_i32_0 = arith.constant 0 : i32
    %c0_i32_1 = arith.constant 0 : i32
    return %c0_i32, %c0_i32_0 : i32, i32
  }
  func.func @transform_4(%arg0: i32) -> (i32, i32) {
    %c0_i32 = arith.constant 0 : i32
    %c0_i32_0 = arith.constant 0 : i32
    return %arg0, %c0_i32 : i32, i32
  }
  func.func @transform_5(%arg0: i32) -> (i32, i32) {
    %c0_i32 = arith.constant 0 : i32
    %c0_i32_0 = arith.constant 0 : i32
    return %arg0, %c0_i32 : i32, i32
  }
}

</mosaic_0001>

<llo_original>
// kernel: tpu_custom_call.1
$region0: #{tpu_custom_call.1}
  #allocation0 [shape = 'u32[]', space=smem, size = 0x4, offset = 0x4, fixed_abs, tag = 'smem constant byte address 0x4 - core index']
  #allocation1 [shape = 'u32[144,128]{1,0:T(1,128)}', space=vmem, size = 0x12000, scoped, tag = 'internal scratch']
  %s0 = inlined_call_operand.vmem [shape: bf16[12800,108], index: 0, kind: input, shape index: {}]
  %s1 = inlined_call_operand.vmem [shape: bf16[108,128], index: 1, kind: input, shape index: {}]
  %s2 = inlined_call_operand.vmem [shape: f32[1,128], index: 2, kind: input, shape index: {}]
  %s3 = inlined_call_operand.vmem [shape: f32[1,128], index: 3, kind: input, shape index: {}]
  %s4 = inlined_call_operand.vmem [shape: f32[12800,1], index: 4, kind: input, shape index: {}]
  %s5 = inlined_call_operand.hbm [shape: bf16[12800,128], index: 5, kind: output, shape index: {}]
  %s6 = sld [smem:[#allocation0]]
  $region53: #{tpu_custom_call.1} parent=0
    _
  %s8 = ssub.s32 1, %s6
  %s9 = scalar_select 0, %s8, %s6
  $region1: #{tpu_custom_call.1} parent=0
    #allocation2 [shape = 'u8[524288]{0}', space=vmem, size = 0x80000, scoped, tag = 'output window, operand 0']
    #allocation3 [shape = 's32[2]{0}', space=sflag, size = 0x8, scoped, tag = 'scoped memory for tpu_custom_call.1']
    %10 = vsyncpa [#allocation3], 0
    %s11 = scalar_lea.sflag [#allocation3], 1
    %12 = vsyncpa %s11, 0
    loop: start=0, step=1, limit=15
    $region2: #{tpu_custom_call.1} parent=1 // loop_pre_header
      _
    $region3: #{tpu_custom_call.1} parent=1 // loop_header
      %s14 = sphi 0, %s18
      %p15 = scmp.ge.s32.totalorder %s14, 15
      %s24 = sphi 0, %s26
      %s27 = sphi 0, %s24
      %s28 = sphi 0, %s27
      %s44 = sphi 0, %s28
      %s48 = sphi 0, %s48
      %s50 = sphi 0, %s48
      %s51 = sphi 0, %s50
      %s65 = sphi 0, %s51
      %s69 = sphi 0, %s69
      %s71 = sphi 0, %s69
      %s72 = sphi 0, %s71
      %s86 = sphi 0, %s72
      %s90 = sphi 0, %s90
      %s92 = sphi 0, %s90
      %s93 = sphi 0, %s92
      %s107 = sphi 0, %s93
      %s113 = sphi 0, %s115
      %s116 = sphi 0, %s113
      %s117 = sphi 0, %s116
      %s133 = sphi 0, %s117
      %s139 = sphi 0, %s141
      %s142 = sphi 0, %s139
      %s143 = sphi 0, %s142
      %s159 = sphi 0, %s143
    $region4: #{tpu_custom_call.1} parent=1 // loop_header_branch
      %17 = sbr.rel (%p15) target = $region8
    $region5: #{tpu_custom_call.1} parent=1 // loop_body
      %s19 = ssub.s32 %s14, 1
      %s20 = ssub.s32 %s14, 2
      %s21 = sadd.s32 %s14, 1
      %s22 = ssub.s32 %s14, %s21
      %p23 = scmp.eq.s32.totalorder %s22, 0
      %s25 = sadd.s32 %s24, 1
      %s26 = scalar_select %p23, %s24, %s25
      %p29 = pneg %p23
      %p30 = scmp.eq.s32.totalorder %s14, 12
      %p31 = por %p29, %p30
      %p32 = scmp.ne.s32.totalorder %s24, %s27
      %p33 = scmp.eq.s32.totalorder %s14, 0
      %p34 = por %p32, %p33
      %p35 = scmp.ne.s32.totalorder %s24, %s27
      %p36 = scmp.eq.s32.totalorder %s19, 12
      %p37 = por %p35, %p36
      %p38 = scmp.ne.s32.totalorder %s27, %s28
      %p39 = scmp.eq.s32.totalorder %s19, 0
      %p40 = por %p38, %p39
      %p41 = scmp.ne.s32.totalorder %s27, %s28
      %p42 = scmp.eq.s32.totalorder %s20, 12
      %p43 = por %p41, %p42
      %p45 = scmp.ne.s32.totalorder %s28, %s44
      %p46 = scmp.eq.s32.totalorder %s20, 0
      %p47 = por %p45, %p46
      %s49 = sadd.s32 %s48, 1
      %p52 = scmp.eq.s32.totalorder %s14, 12
      %p53 = scmp.ne.s32.totalorder %s48, %s50
      %p54 = scmp.eq.s32.totalorder %s14, 0
      %p55 = por %p53, %p54
      %p56 = scmp.ne.s32.totalorder %s48, %s50
      %p57 = scmp.eq.s32.totalorder %s19, 12
      %p58 = por %p56, %p57
      %p59 = scmp.ne.s32.totalorder %s50, %s51
      %p60 = scmp.eq.s32.totalorder %s19, 0
      %p61 = por %p59, %p60
      %p62 = scmp.ne.s32.totalorder %s50, %s51
      %p63 = scmp.eq.s32.totalorder %s20, 12
      %p64 = por %p62, %p63
      %p66 = scmp.ne.s32.totalorder %s51, %s65
      %p67 = scmp.eq.s32.totalorder %s20, 0
      %p68 = por %p66, %p67
      %s70 = sadd.s32 %s69, 1
      %p73 = scmp.eq.s32.totalorder %s14, 12
      %p74 = scmp.ne.s32.totalorder %s69, %s71
      %p75 = scmp.eq.s32.totalorder %s14, 0
      %p76 = por %p74, %p75
      %p77 = scmp.ne.s32.totalorder %s69, %s71
      %p78 = scmp.eq.s32.totalorder %s19, 12
      %p79 = por %p77, %p78
      %p80 = scmp.ne.s32.totalorder %s71, %s72
      %p81 = scmp.eq.s32.totalorder %s19, 0
      %p82 = por %p80, %p81
      %p83 = scmp.ne.s32.totalorder %s71, %s72
      %p84 = scmp.eq.s32.totalorder %s20, 12
      %p85 = por %p83, %p84
      %p87 = scmp.ne.s32.totalorder %s72, %s86
      %p88 = scmp.eq.s32.totalorder %s20, 0
      %p89 = por %p87, %p88
      %s91 = sadd.s32 %s90, 1
      %p94 = scmp.eq.s32.totalorder %s14, 12
      %p95 = scmp.ne.s32.totalorder %s90, %s92
      %p96 = scmp.eq.s32.totalorder %s14, 0
      %p97 = por %p95, %p96
      %p98 = scmp.ne.s32.totalorder %s90, %s92
      %p99 = scmp.eq.s32.totalorder %s19, 12
      %p100 = por %p98, %p99
      %p101 = scmp.ne.s32.totalorder %s92, %s93
      %p102 = scmp.eq.s32.totalorder %s19, 0
      %p103 = por %p101, %p102
      %p104 = scmp.ne.s32.totalorder %s92, %s93
      %p105 = scmp.eq.s32.totalorder %s20, 12
      %p106 = por %p104, %p105
      %p108 = scmp.ne.s32.totalorder %s93, %s107
      %p109 = scmp.eq.s32.totalorder %s20, 0
      %p110 = por %p108, %p109
      %s111 = ssub.s32 %s14, %s21
      %p112 = scmp.eq.s32.totalorder %s111, 0
      %s114 = sadd.s32 %s113, 1
      %s115 = scalar_select %p112, %s113, %s114
      %p118 = pneg %p112
      %p119 = scmp.eq.s32.totalorder %s14, 12
      %p120 = por %p118, %p119
      %p121 = scmp.ne.s32.totalorder %s113, %s116
      %p122 = scmp.eq.s32.totalorder %s14, 0
      %p123 = por %p121, %p122
      %p124 = scmp.ne.s32.totalorder %s113, %s116
      %p125 = scmp.eq.s32.totalorder %s19, 12
      %p126 = por %p124, %p125
      %p127 = scmp.ne.s32.totalorder %s116, %s117
      %p128 = scmp.eq.s32.totalorder %s19, 0
      %p129 = por %p127, %p128
      %p130 = scmp.ne.s32.totalorder %s116, %s117
      %p131 = scmp.eq.s32.totalorder %s20, 12
      %p132 = por %p130, %p131
      %p134 = scmp.ne.s32.totalorder %s117, %s133
      %p135 = scmp.eq.s32.totalorder %s20, 0
      %p136 = por %p134, %p135
      %s137 = ssub.s32 %s14, %s21
      %p138 = scmp.eq.s32.totalorder %s137, 0
      %s140 = sadd.s32 %s139, 1
      %s141 = scalar_select %p138, %s139, %s140
      %p144 = pneg %p138
      %p145 = scmp.eq.s32.totalorder %s14, 12
      %p146 = por %p144, %p145
      %p147 = scmp.ne.s32.totalorder %s139, %s142
      %p148 = scmp.eq.s32.totalorder %s14, 0
      %p149 = por %p147, %p148
      %p150 = scmp.ne.s32.totalorder %s139, %s142
      %p151 = scmp.eq.s32.totalorder %s19, 12
      %p152 = por %p150, %p151
      %p153 = scmp.ne.s32.totalorder %s142, %s143
      %p154 = scmp.eq.s32.totalorder %s19, 0
      %p155 = por %p153, %p154
      %p156 = scmp.ne.s32.totalorder %s142, %s143
      %p157 = scmp.eq.s32.totalorder %s20, 12
      %p158 = por %p156, %p157
      %p160 = scmp.ne.s32.totalorder %s143, %s159
      %p161 = scmp.eq.s32.totalorder %s20, 0
      %p162 = por %p160, %p161
      %p163 = scmp.le.s32.totalorder 1, %s14
      %p164 = scmp.lt.s32.totalorder %s14, 14
      %p165 = pnand %p163, %p164
      %p166 = pneg %p165
      // Predicated region
      $region9: #{tpu_custom_call.1} parent=5 // pred_check
        _
      $region10: #{tpu_custom_call.1} parent=5 // pred_check_branch
        %168 = sbr.rel (%p165) target = $region12
      $region11: #{tpu_custom_call.1} parent=5 // pred_region
        %s169 = ssub.s32 %s14, 1
        // Predicated region
        $region13: #{tpu_custom_call.1} parent=11 // pred_check
          %p170 = pneg %p61
        $region14: #{tpu_custom_call.1} parent=11 // pred_check_branch
          %172 = sbr.rel (%p170) target = $region16
        $region15: #{tpu_custom_call.1} parent=11 // pred_region
          _
        $region16: #{tpu_custom_call.1} parent=11 // pred_fallthru
          _
        // Predicated region
        $region17: #{tpu_custom_call.1} parent=11 // pred_check
          %p173 = pneg %p82
        $region18: #{tpu_custom_call.1} parent=11 // pred_check_branch
          %175 = sbr.rel (%p173) target = $region20
        $region19: #{tpu_custom_call.1} parent=11 // pred_region
          _
        $region20: #{tpu_custom_call.1} parent=11 // pred_fallthru
          _
        // Predicated region
        $region21: #{tpu_custom_call.1} parent=11 // pred_check
          %p176 = pneg %p103
        $region22: #{tpu_custom_call.1} parent=11 // pred_check_branch
          %178 = sbr.rel (%p176) target = $region24
        $region23: #{tpu_custom_call.1} parent=11 // pred_region
          _
        $region24: #{tpu_custom_call.1} parent=11 // pred_fallthru
          _
      $region12: #{tpu_custom_call.1} parent=5 // pred_fallthru
        _
      %p179 = scmp.lt.s32.totalorder %s14, 13
      // Predicated region
      $region25: #{tpu_custom_call.1} parent=5 // pred_check
        %p180 = pneg %p179
      $region26: #{tpu_custom_call.1} parent=5 // pred_check_branch
        %182 = sbr.rel (%p180) target = $region28
      $region27: #{tpu_custom_call.1} parent=5 // pred_region
        // Predicated region
        $region29: #{tpu_custom_call.1} parent=27 // pred_check
          %p183 = pneg %p34
        $region30: #{tpu_custom_call.1} parent=27 // pred_check_branch
          %185 = sbr.rel (%p183) target = $region32
        $region31: #{tpu_custom_call.1} parent=27 // pred_region
          %s186 = smul.u32 128, %s14
          %s187 = ssub.s32 1600, %s186
          %p188 = scmp.lt.s32.totalorder %s187, 128
          %s189 = scalar_select %p188, %s187, 128
          %s190 = smul.u32 64, %s189
          %p191 = scmp.lt.s32.totalorder %s186, 1599
          %s192 = scalar_select %p191, %s186, 1599
          %s193 = smul.addr %s192, 4
          %s194 = scalar_lea.vmem %s0, %s193
          %s195 = smul.u32 128, %s14
          %s196 = ssub.s32 1600, %s195
          %p197 = scmp.lt.s32.totalorder %s196, 128
          %s198 = scalar_select %p197, %s196, 128
          %s199 = smul.u32 64, %s198
        $region32: #{tpu_custom_call.1} parent=27 // pred_fallthru
          _
        // Predicated region
        $region33: #{tpu_custom_call.1} parent=27 // pred_check
          %p200 = pneg %p123
        $region34: #{tpu_custom_call.1} parent=27 // pred_check_branch
          %202 = sbr.rel (%p200) target = $region36
        $region35: #{tpu_custom_call.1} parent=27 // pred_region
          %s203 = smul.u32 128, %s14
          %s204 = ssub.s32 1600, %s203
          %p205 = scmp.lt.s32.totalorder %s204, 128
          %s206 = scalar_select %p205, %s204, 128
          %s207 = smul.u32 128, %s206
          %p208 = scmp.lt.s32.totalorder %s203, 1599
          %s209 = scalar_select %p208, %s203, 1599
          %s210 = smul.addr %s209, 8
          %s211 = scalar_lea.vmem %s4, %s210
          %s212 = smul.u32 128, %s14
          %s213 = ssub.s32 1600, %s212
          %p214 = scmp.lt.s32.totalorder %s213, 128
          %s215 = scalar_select %p214, %s213, 128
          %s216 = smul.u32 128, %s215
        $region36: #{tpu_custom_call.1} parent=27 // pred_fallthru
          _
      $region28: #{tpu_custom_call.1} parent=5 // pred_fallthru
        _
      %p217 = scmp.le.s32.totalorder 1, %s14
      %p218 = scmp.lt.s32.totalorder %s14, 14
      %p219 = pnand %p217, %p218
      %p220 = pneg %p219
      // Predicated region
      $region37: #{tpu_custom_call.1} parent=5 // pred_check
        _
      $region38: #{tpu_custom_call.1} parent=5 // pred_check_branch
        %222 = sbr.rel (%p219) target = $region40
      $region39: #{tpu_custom_call.1} parent=5 // pred_region
        %s223 = ssub.s32 %s14, 1
        %s224 = smul.u32 128, %s19
        %s225 = ssub.s32 1600, %s224
        %p226 = scmp.lt.s32.totalorder %s225, 128
        %s227 = scalar_select %p226, %s225, 128
        %s228 = smul.u32 64, %s227
        %p229 = scmp.lt.s32.totalorder %s224, 1599
        %s230 = scalar_select %p229, %s224, 1599
        %s231 = smul.addr %s230, 4
        %s232 = scalar_lea.vmem %s0, %s231
        %p233 = pneg %p40
        %p234 = pneg %p37
        %p235 = pneg %p61
        %p236 = pneg %p58
        %p237 = pneg %p82
        %p238 = pneg %p79
        %p239 = pneg %p103
        %p240 = pneg %p100
        %s241 = smul.u32 128, %s19
        %s242 = ssub.s32 1600, %s241
        %p243 = scmp.lt.s32.totalorder %s242, 128
        %s244 = scalar_select %p243, %s242, 128
        %s245 = smul.u32 128, %s244
        %p246 = scmp.lt.s32.totalorder %s241, 1599
        %s247 = scalar_select %p246, %s241, 1599
        %s248 = smul.addr %s247, 8
        %s249 = scalar_lea.vmem %s4, %s248
        %p250 = pneg %p129
        %p251 = pneg %p126
        %p252 = pneg %p155
        %p253 = pneg %p152
        %s254 = sand.u32 %s142, 1
        %s255 = scalar_lea.sflag [#allocation3], %s254
        %s256 = sand.u32 %s142, 1
        %s257 = smul.addr %s256, 512
        %s258 = scalar_lea.vmem [#allocation2], %s257
        %s259 = smul.u32 128, %s19
        %s260 = ssub.s32 1600, %s259
        %p261 = scmp.lt.s32.totalorder %s260, 128
        %s262 = scalar_select %p261, %s260, 128
        %s263 = smul.u32 64, %s262
        %p264 = scmp.lt.s32.totalorder %s259, 1599
        %s265 = scalar_select %p264, %s259, 1599
        %s266 = smul.addr %s265, 4
        %s267 = scalar_lea.vmem %s0, %s266
        %s268 = smul.u32 128, %s19
        %s269 = ssub.s32 1600, %s268
        %p270 = scmp.lt.s32.totalorder %s269, 128
        %s271 = scalar_select %p270, %s269, 128
        %s272 = smul.u32 64, %s271
        %s273 = smul.u32 128, %s19
        %s274 = ssub.s32 1600, %s273
        %p275 = scmp.lt.s32.totalorder %s274, 128
        %s276 = scalar_select %p275, %s274, 128
        %s277 = smul.u32 128, %s276
        %p278 = scmp.lt.s32.totalorder %s273, 1599
        %s279 = scalar_select %p278, %s273, 1599
        %s280 = smul.addr %s279, 8
        %s281 = scalar_lea.vmem %s4, %s280
        %s282 = smul.u32 128, %s19
        %s283 = ssub.s32 1600, %s282
        %p284 = scmp.lt.s32.totalorder %s283, 128
        %s285 = scalar_select %p284, %s283, 128
        %s286 = smul.u32 128, %s285
        %s287 = smul.u32 128, %s19
        %s288 = ssub.s32 1600, %s287
        %p289 = scmp.lt.s32.totalorder %s288, 128
        %s290 = scalar_select %p289, %s288, 128
        %s291 = smul.u32 64, %s290
        %v293 = vld [vmem:[%s267] sm:$0xf]
        %v294 = vld [vmem:[%s267 + $0x4] sm:$0xf]
        %v295 = vld [vmem:[%s267 + $0x8] sm:$0xf]
        %v296 = vld [vmem:[%s267 + $0xc] sm:$0xf]
        %v297 = vld [vmem:[%s267 + $0x10] sm:$0xf]
        %v298 = vld [vmem:[%s267 + $0x14] sm:$0xf]
        %v299 = vld [vmem:[%s267 + $0x18] sm:$0xf]
        %v300 = vld [vmem:[%s267 + $0x1c] sm:$0xf]
        %v301 = vld [vmem:[%s267 + $0x20] sm:$0xf]
        %v302 = vld [vmem:[%s267 + $0x24] sm:$0xf]
        %v303 = vld [vmem:[%s267 + $0x28] sm:$0xf]
        %v304 = vld [vmem:[%s267 + $0x2c] sm:$0xf]
        %v305 = vld [vmem:[%s267 + $0x30] sm:$0xf]
        %v306 = vld [vmem:[%s267 + $0x34] sm:$0xf]
        %v307 = vld [vmem:[%s267 + $0x38] sm:$0xf]
        %v308 = vld [vmem:[%s267 + $0x3c] sm:$0xf]
        %v309 = vld [vmem:[%s267 + $0x40] sm:$0xf]
        %v310 = vld [vmem:[%s267 + $0x44] sm:$0xf]
        %v311 = vld [vmem:[%s267 + $0x48] sm:$0xf]
        %v312 = vld [vmem:[%s267 + $0x4c] sm:$0xf]
        %v313 = vld [vmem:[%s267 + $0x50] sm:$0xf]
        %v314 = vld [vmem:[%s267 + $0x54] sm:$0xf]
        %v315 = vld [vmem:[%s267 + $0x58] sm:$0xf]
        %v316 = vld [vmem:[%s267 + $0x5c] sm:$0xf]
        %v317 = vld [vmem:[%s267 + $0x60] sm:$0xf]
        %v318 = vld [vmem:[%s267 + $0x64] sm:$0xf]
        %v319 = vld [vmem:[%s267 + $0x68] sm:$0xf]
        %v320 = vld [vmem:[%s267 + $0x6c] sm:$0xf]
        %v321 = vld [vmem:[%s267 + $0x70] sm:$0xf]
        %v322 = vld [vmem:[%s267 + $0x74] sm:$0xf]
        %v323 = vld [vmem:[%s267 + $0x78] sm:$0xf]
        %v324 = vld [vmem:[%s267 + $0x7c] sm:$0xf]
        %v325 = vld [vmem:[%s267 + $0x80] sm:$0xf]
        %v326 = vld [vmem:[%s267 + $0x84] sm:$0xf]
        %v327 = vld [vmem:[%s267 + $0x88] sm:$0xf]
        %v328 = vld [vmem:[%s267 + $0x8c] sm:$0xf]
        %v329 = vld [vmem:[%s267 + $0x90] sm:$0xf]
        %v330 = vld [vmem:[%s267 + $0x94] sm:$0xf]
        %v331 = vld [vmem:[%s267 + $0x98] sm:$0xf]
        %v332 = vld [vmem:[%s267 + $0x9c] sm:$0xf]
        %v333 = vld [vmem:[%s267 + $0xa0] sm:$0xf]
        %v334 = vld [vmem:[%s267 + $0xa4] sm:$0xf]
        %v335 = vld [vmem:[%s267 + $0xa8] sm:$0xf]
        %v336 = vld [vmem:[%s267 + $0xac] sm:$0xf]
        %v337 = vld [vmem:[%s267 + $0xb0] sm:$0xf]
        %v338 = vld [vmem:[%s267 + $0xb4] sm:$0xf]
        %v339 = vld [vmem:[%s267 + $0xb8] sm:$0xf]
        %v340 = vld [vmem:[%s267 + $0xbc] sm:$0xf]
        %v341 = vld [vmem:[%s267 + $0xc0] sm:$0xf]
        %v342 = vld [vmem:[%s267 + $0xc4] sm:$0xf]
        %v343 = vld [vmem:[%s267 + $0xc8] sm:$0xf]
        %v344 = vld [vmem:[%s267 + $0xcc] sm:$0xf]
        %v345 = vld [vmem:[%s267 + $0xd0] sm:$0xf]
        %v346 = vld [vmem:[%s267 + $0xd4] sm:$0xf]
        %v347 = vld [vmem:[%s267 + $0xd8] sm:$0xf]
        %v348 = vld [vmem:[%s267 + $0xdc] sm:$0xf]
        %v349 = vld [vmem:[%s267 + $0xe0] sm:$0xf]
        %v350 = vld [vmem:[%s267 + $0xe4] sm:$0xf]
        %v351 = vld [vmem:[%s267 + $0xe8] sm:$0xf]
        %v352 = vld [vmem:[%s267 + $0xec] sm:$0xf]
        %v353 = vld [vmem:[%s267 + $0xf0] sm:$0xf]
        %v354 = vld [vmem:[%s267 + $0xf4] sm:$0xf]
        %v355 = vld [vmem:[%s267 + $0xf8] sm:$0xf]
        %v356 = vld [vmem:[%s267 + $0xfc] sm:$0xf]
        %v357 = vld [vmem:[%s267 + $0x100] sm:$0xf]
        %v358 = vld [vmem:[%s267 + $0x104] sm:$0xf]
        %v359 = vld [vmem:[%s267 + $0x108] sm:$0xf]
        %v360 = vld [vmem:[%s267 + $0x10c] sm:$0xf]
        %v361 = vld [vmem:[%s267 + $0x110] sm:$0xf]
        %v362 = vld [vmem:[%s267 + $0x114] sm:$0xf]
        %v363 = vld [vmem:[%s267 + $0x118] sm:$0xf]
        %v364 = vld [vmem:[%s267 + $0x11c] sm:$0xf]
        %v365 = vld [vmem:[%s267 + $0x120] sm:$0xf]
        %v366 = vld [vmem:[%s267 + $0x124] sm:$0xf]
        %v367 = vld [vmem:[%s267 + $0x128] sm:$0xf]
        %v368 = vld [vmem:[%s267 + $0x12c] sm:$0xf]
        %v369 = vld [vmem:[%s267 + $0x130] sm:$0xf]
        %v370 = vld [vmem:[%s267 + $0x134] sm:$0xf]
        %v371 = vld [vmem:[%s267 + $0x138] sm:$0xf]
        %v372 = vld [vmem:[%s267 + $0x13c] sm:$0xf]
        %v373 = vld [vmem:[%s267 + $0x140] sm:$0xf]
        %v374 = vld [vmem:[%s267 + $0x144] sm:$0xf]
        %v375 = vld [vmem:[%s267 + $0x148] sm:$0xf]
        %v376 = vld [vmem:[%s267 + $0x14c] sm:$0xf]
        %v377 = vld [vmem:[%s267 + $0x150] sm:$0xf]
        %v378 = vld [vmem:[%s267 + $0x154] sm:$0xf]
        %v379 = vld [vmem:[%s267 + $0x158] sm:$0xf]
        %v380 = vld [vmem:[%s267 + $0x15c] sm:$0xf]
        %v381 = vld [vmem:[%s267 + $0x160] sm:$0xf]
        %v382 = vld [vmem:[%s267 + $0x164] sm:$0xf]
        %v383 = vld [vmem:[%s267 + $0x168] sm:$0xf]
        %v384 = vld [vmem:[%s267 + $0x16c] sm:$0xf]
        %v385 = vld [vmem:[%s267 + $0x170] sm:$0xf]
        %v386 = vld [vmem:[%s267 + $0x174] sm:$0xf]
        %v387 = vld [vmem:[%s267 + $0x178] sm:$0xf]
        %v388 = vld [vmem:[%s267 + $0x17c] sm:$0xf]
        %v389 = vld [vmem:[%s267 + $0x180] sm:$0xf]
        %v390 = vld [vmem:[%s267 + $0x184] sm:$0xf]
        %v391 = vld [vmem:[%s267 + $0x188] sm:$0xf]
        %v392 = vld [vmem:[%s267 + $0x18c] sm:$0xf]
        %v393 = vld [vmem:[%s267 + $0x190] sm:$0xf]
        %v394 = vld [vmem:[%s267 + $0x194] sm:$0xf]
        %v395 = vld [vmem:[%s267 + $0x198] sm:$0xf]
        %v396 = vld [vmem:[%s267 + $0x19c] sm:$0xf]
        %v397 = vld [vmem:[%s267 + $0x1a0] sm:$0xf]
        %v398 = vld [vmem:[%s267 + $0x1a4] sm:$0xf]
        %v399 = vld [vmem:[%s267 + $0x1a8] sm:$0xf]
        %v400 = vld [vmem:[%s267 + $0x1ac] sm:$0xf]
        %v401 = vld [vmem:[%s267 + $0x1b0] sm:$0xf]
        %v402 = vld [vmem:[%s267 + $0x1b4] sm:$0xf]
        %v403 = vld [vmem:[%s267 + $0x1b8] sm:$0xf]
        %v404 = vld [vmem:[%s267 + $0x1bc] sm:$0xf]
        %v405 = vld [vmem:[%s267 + $0x1c0] sm:$0xf]
        %v406 = vld [vmem:[%s267 + $0x1c4] sm:$0xf]
        %v407 = vld [vmem:[%s267 + $0x1c8] sm:$0xf]
        %v408 = vld [vmem:[%s267 + $0x1cc] sm:$0xf]
        %v409 = vld [vmem:[%s267 + $0x1d0] sm:$0xf]
        %v410 = vld [vmem:[%s267 + $0x1d4] sm:$0xf]
        %v411 = vld [vmem:[%s267 + $0x1d8] sm:$0xf]
        %v412 = vld [vmem:[%s267 + $0x1dc] sm:$0xf]
        %v413 = vld [vmem:[%s267 + $0x1e0] sm:$0xf]
        %v414 = vld [vmem:[%s267 + $0x1e4] sm:$0xf]
        %v415 = vld [vmem:[%s267 + $0x1e8] sm:$0xf]
        %v416 = vld [vmem:[%s267 + $0x1ec] sm:$0xf]
        %v417 = vld [vmem:[%s267 + $0x1f0] sm:$0xf]
        %v418 = vld [vmem:[%s267 + $0x1f4] sm:$0xf]
        %v419 = vld [vmem:[%s267 + $0x1f8] sm:$0xf]
        %v420 = vld [vmem:[%s267 + $0x1fc] sm:$0xf]
        %v421 = vld [vmem:[%s1] sm:$0xf]
        %v422 = vld [vmem:[%s1 + $0x4] sm:$0xf]
        %v423 = vld [vmem:[%s1 + $0x8] sm:$0xf]
        %v424 = vld [vmem:[%s1 + $0xc] sm:$0xf]
        %v425 = vld [vmem:[%s1 + $0x10] sm:$0xf]
        %v426 = vld [vmem:[%s1 + $0x14] sm:$0xf]
        %v427 = vld [vmem:[%s1 + $0x18] sm:$0xf]
        %v428 = vld [vmem:[%s1 + $0x1c] sm:$0xf]
        %v429 = vld [vmem:[%s1 + $0x20] sm:$0xf]
        %v430 = vld [vmem:[%s1 + $0x24] sm:$0xf]
        %v431 = vld [vmem:[%s1 + $0x28] sm:$0xf]
        %v432 = vld [vmem:[%s1 + $0x2c] sm:$0xf]
        %v433 = vld [vmem:[%s1 + $0x30] sm:$0xf]
        %v434 = vld [vmem:[%s1 + $0x34] sm:$0x3]
        %v563 = vunpack.c.l.b16 %v293
        %v564 = vunpack.c.l.b16 %v294
        %v565 = vunpack.c.l.b16 %v295
        %v566 = vunpack.c.l.b16 %v296
        %v567 = vunpack.c.l.b16 %v297
        %v568 = vunpack.c.l.b16 %v298
        %v569 = vunpack.c.l.b16 %v299
        %v570 = vunpack.c.l.b16 %v300
        %v571 = vunpack.c.l.b16 %v301
        %v572 = vunpack.c.l.b16 %v302
        %v573 = vunpack.c.l.b16 %v303
        %v574 = vunpack.c.l.b16 %v304
        %v575 = vunpack.c.l.b16 %v305
        %v576 = vunpack.c.l.b16 %v306
        %v577 = vunpack.c.l.b16 %v307
        %v578 = vunpack.c.l.b16 %v308
        %v579 = vunpack.c.l.b16 %v309
        %v580 = vunpack.c.l.b16 %v310
        %v581 = vunpack.c.l.b16 %v311
        %v582 = vunpack.c.l.b16 %v312
        %v583 = vunpack.c.l.b16 %v313
        %v584 = vunpack.c.l.b16 %v314
        %v585 = vunpack.c.l.b16 %v315
        %v586 = vunpack.c.l.b16 %v316
        %v587 = vunpack.c.l.b16 %v317
        %v588 = vunpack.c.l.b16 %v318
        %v589 = vunpack.c.l.b16 %v319
        %v590 = vunpack.c.l.b16 %v320
        %v591 = vunpack.c.l.b16 %v321
        %v592 = vunpack.c.l.b16 %v322
        %v593 = vunpack.c.l.b16 %v323
        %v594 = vunpack.c.l.b16 %v324
        %v595 = vunpack.c.l.b16 %v325
        %v596 = vunpack.c.l.b16 %v326
        %v597 = vunpack.c.l.b16 %v327
        %v598 = vunpack.c.l.b16 %v328
        %v599 = vunpack.c.l.b16 %v329
        %v600 = vunpack.c.l.b16 %v330
        %v601 = vunpack.c.l.b16 %v331
        %v602 = vunpack.c.l.b16 %v332
        %v603 = vunpack.c.l.b16 %v333
        %v604 = vunpack.c.l.b16 %v334
        %v605 = vunpack.c.l.b16 %v335
        %v606 = vunpack.c.l.b16 %v336
        %v607 = vunpack.c.l.b16 %v337
        %v608 = vunpack.c.l.b16 %v338
        %v609 = vunpack.c.l.b16 %v339
        %v610 = vunpack.c.l.b16 %v340
        %v611 = vunpack.c.l.b16 %v341
        %v612 = vunpack.c.l.b16 %v342
        %v613 = vunpack.c.l.b16 %v343
        %v614 = vunpack.c.l.b16 %v344
        %v615 = vunpack.c.l.b16 %v345
        %v616 = vunpack.c.l.b16 %v346
        %v617 = vunpack.c.l.b16 %v347
        %v618 = vunpack.c.l.b16 %v348
        %v619 = vunpack.c.l.b16 %v349
        %v620 = vunpack.c.l.b16 %v350
        %v621 = vunpack.c.l.b16 %v351
        %v622 = vunpack.c.l.b16 %v352
        %v623 = vunpack.c.l.b16 %v353
        %v624 = vunpack.c.l.b16 %v354
        %v625 = vunpack.c.l.b16 %v355
        %v626 = vunpack.c.l.b16 %v356
        %v627 = vunpack.c.l.b16 %v357
        %v628 = vunpack.c.l.b16 %v358
        %v629 = vunpack.c.l.b16 %v359
        %v630 = vunpack.c.l.b16 %v360
        %v631 = vunpack.c.l.b16 %v361
        %v632 = vunpack.c.l.b16 %v362
        %v633 = vunpack.c.l.b16 %v363
        %v634 = vunpack.c.l.b16 %v364
        %v635 = vunpack.c.l.b16 %v365
        %v636 = vunpack.c.l.b16 %v366
        %v637 = vunpack.c.l.b16 %v367
        %v638 = vunpack.c.l.b16 %v368
        %v639 = vunpack.c.l.b16 %v369
        %v640 = vunpack.c.l.b16 %v370
        %v641 = vunpack.c.l.b16 %v371
        %v642 = vunpack.c.l.b16 %v372
        %v643 = vunpack.c.l.b16 %v373
        %v644 = vunpack.c.l.b16 %v374
        %v645 = vunpack.c.l.b16 %v375
        %v646 = vunpack.c.l.b16 %v376
        %v647 = vunpack.c.l.b16 %v377
        %v648 = vunpack.c.l.b16 %v378
        %v649 = vunpack.c.l.b16 %v379
        %v650 = vunpack.c.l.b16 %v380
        %v651 = vunpack.c.l.b16 %v381
        %v652 = vunpack.c.l.b16 %v382
        %v653 = vunpack.c.l.b16 %v383
        %v654 = vunpack.c.l.b16 %v384
        %v655 = vunpack.c.l.b16 %v385
        %v656 = vunpack.c.l.b16 %v386
        %v657 = vunpack.c.l.b16 %v387
        %v658 = vunpack.c.l.b16 %v388
        %v659 = vunpack.c.l.b16 %v389
        %v660 = vunpack.c.l.b16 %v390
        %v661 = vunpack.c.l.b16 %v391
        %v662 = vunpack.c.l.b16 %v392
        %v663 = vunpack.c.l.b16 %v393
        %v664 = vunpack.c.l.b16 %v394
        %v665 = vunpack.c.l.b16 %v395
        %v666 = vunpack.c.l.b16 %v396
        %v667 = vunpack.c.l.b16 %v397
        %v668 = vunpack.c.l.b16 %v398
        %v669 = vunpack.c.l.b16 %v399
        %v670 = vunpack.c.l.b16 %v400
        %v671 = vunpack.c.l.b16 %v401
        %v672 = vunpack.c.l.b16 %v402
        %v673 = vunpack.c.l.b16 %v403
        %v674 = vunpack.c.l.b16 %v404
        %v675 = vunpack.c.l.b16 %v405
        %v676 = vunpack.c.l.b16 %v406
        %v677 = vunpack.c.l.b16 %v407
        %v678 = vunpack.c.l.b16 %v408
        %v679 = vunpack.c.l.b16 %v409
        %v680 = vunpack.c.l.b16 %v410
        %v681 = vunpack.c.l.b16 %v411
        %v682 = vunpack.c.l.b16 %v412
        %v683 = vunpack.c.l.b16 %v413
        %v684 = vunpack.c.l.b16 %v414
        %v685 = vunpack.c.l.b16 %v415
        %v686 = vunpack.c.l.b16 %v416
        %v687 = vunpack.c.l.b16 %v417
        %v688 = vunpack.c.l.b16 %v418
        %v689 = vunpack.c.l.b16 %v419
        %v690 = vunpack.c.l.b16 %v420
        %v691 = vpack.c.b16 %v564, %v563
        %v692 = vpack.c.b16 %v566, %v565
        %v693 = vpack.c.b16 %v568, %v567
        %v694 = vpack.c.b16 %v570, %v569
        %v695 = vpack.c.b16 %v572, %v571
        %v696 = vpack.c.b16 %v574, %v573
        %v697 = vpack.c.b16 %v576, %v575
        %v698 = vpack.c.b16 %v578, %v577
        %v699 = vpack.c.b16 %v580, %v579
        %v700 = vpack.c.b16 %v582, %v581
        %v701 = vpack.c.b16 %v584, %v583
        %v702 = vpack.c.b16 %v586, %v585
        %v703 = vpack.c.b16 %v588, %v587
        %v704 = vpack.c.b16 %v590, %v589
        %v705 = vpack.c.b16 %v592, %v591
        %v706 = vpack.c.b16 %v594, %v593
        %v707 = vpack.c.b16 %v596, %v595
        %v708 = vpack.c.b16 %v598, %v597
        %v709 = vpack.c.b16 %v600, %v599
        %v710 = vpack.c.b16 %v602, %v601
        %v711 = vpack.c.b16 %v604, %v603
        %v712 = vpack.c.b16 %v606, %v605
        %v713 = vpack.c.b16 %v608, %v607
        %v714 = vpack.c.b16 %v610, %v609
        %v715 = vpack.c.b16 %v612, %v611
        %v716 = vpack.c.b16 %v614, %v613
        %v717 = vpack.c.b16 %v616, %v615
        %v718 = vpack.c.b16 %v618, %v617
        %v719 = vpack.c.b16 %v620, %v619
        %v720 = vpack.c.b16 %v622, %v621
        %v721 = vpack.c.b16 %v624, %v623
        %v722 = vpack.c.b16 %v626, %v625
        %v723 = vpack.c.b16 %v628, %v627
        %v724 = vpack.c.b16 %v630, %v629
        %v725 = vpack.c.b16 %v632, %v631
        %v726 = vpack.c.b16 %v634, %v633
        %v727 = vpack.c.b16 %v636, %v635
        %v728 = vpack.c.b16 %v638, %v637
        %v729 = vpack.c.b16 %v640, %v639
        %v730 = vpack.c.b16 %v642, %v641
        %v731 = vpack.c.b16 %v644, %v643
        %v732 = vpack.c.b16 %v646, %v645
        %v733 = vpack.c.b16 %v648, %v647
        %v734 = vpack.c.b16 %v650, %v649
        %v735 = vpack.c.b16 %v652, %v651
        %v736 = vpack.c.b16 %v654, %v653
        %v737 = vpack.c.b16 %v656, %v655
        %v738 = vpack.c.b16 %v658, %v657
        %v739 = vpack.c.b16 %v660, %v659
        %v740 = vpack.c.b16 %v662, %v661
        %v741 = vpack.c.b16 %v664, %v663
        %v742 = vpack.c.b16 %v666, %v665
        %v743 = vpack.c.b16 %v668, %v667
        %v744 = vpack.c.b16 %v670, %v669
        %v745 = vpack.c.b16 %v672, %v671
        %v746 = vpack.c.b16 %v674, %v673
        %v747 = vpack.c.b16 %v676, %v675
        %v748 = vpack.c.b16 %v678, %v677
        %v749 = vpack.c.b16 %v680, %v679
        %v750 = vpack.c.b16 %v682, %v681
        %v751 = vpack.c.b16 %v684, %v683
        %v752 = vpack.c.b16 %v686, %v685
        %v753 = vpack.c.b16 %v688, %v687
        %v754 = vpack.c.b16 %v690, %v689
        %v769 = vunpack.c.l.b16 %v421
        %v770 = vunpack.c.l.b16 %v422
        %v771 = vunpack.c.l.b16 %v423
        %v772 = vunpack.c.l.b16 %v424
        %v773 = vunpack.c.l.b16 %v425
        %v774 = vunpack.c.l.b16 %v426
        %v775 = vunpack.c.l.b16 %v427
        %v776 = vunpack.c.l.b16 %v428
        %v777 = vunpack.c.l.b16 %v429
        %v778 = vunpack.c.l.b16 %v430
        %v779 = vunpack.c.l.b16 %v431
        %v780 = vunpack.c.l.b16 %v432
        %v781 = vunpack.c.l.b16 %v433
        %v782 = vunpack.c.l.b16 %v434
        %v783 = vpack.c.b16 %v770, %v769
        %v784 = vpack.c.b16 %v772, %v771
        %v785 = vpack.c.b16 %v774, %v773
        %v786 = vpack.c.b16 %v776, %v775
        %v787 = vpack.c.b16 %v778, %v777
        %v788 = vpack.c.b16 %v780, %v779
        %v789 = vpack.c.b16 %v782, %v781
        %vm796 = vcmask 883712
        %v798 = vsel %vm796, %v691, 0
        %v801 = vsel %vm796, %v692, 0
        %v804 = vsel %vm796, %v693, 0
        %v807 = vsel %vm796, %v694, 0
        %v810 = vsel %vm796, %v695, 0
        %v813 = vsel %vm796, %v696, 0
        %v816 = vsel %vm796, %v697, 0
        %v819 = vsel %vm796, %v698, 0
        %v822 = vsel %vm796, %v699, 0
        %v825 = vsel %vm796, %v700, 0
        %v828 = vsel %vm796, %v701, 0
        %v831 = vsel %vm796, %v702, 0
        %v834 = vsel %vm796, %v703, 0
        %v837 = vsel %vm796, %v704, 0
        %v840 = vsel %vm796, %v705, 0
        %v843 = vsel %vm796, %v706, 0
        %v846 = vsel %vm796, %v707, 0
        %v849 = vsel %vm796, %v708, 0
        %v852 = vsel %vm796, %v709, 0
        %v855 = vsel %vm796, %v710, 0
        %v858 = vsel %vm796, %v711, 0
        %v861 = vsel %vm796, %v712, 0
        %v864 = vsel %vm796, %v713, 0
        %v867 = vsel %vm796, %v714, 0
        %v870 = vsel %vm796, %v715, 0
        %v873 = vsel %vm796, %v716, 0
        %v876 = vsel %vm796, %v717, 0
        %v879 = vsel %vm796, %v718, 0
        %v882 = vsel %vm796, %v719, 0
        %v885 = vsel %vm796, %v720, 0
        %v888 = vsel %vm796, %v721, 0
        %v891 = vsel %vm796, %v722, 0
        %v894 = vsel %vm796, %v723, 0
        %v897 = vsel %vm796, %v724, 0
        %v900 = vsel %vm796, %v725, 0
        %v903 = vsel %vm796, %v726, 0
        %v906 = vsel %vm796, %v727, 0
        %v909 = vsel %vm796, %v728, 0
        %v912 = vsel %vm796, %v729, 0
        %v915 = vsel %vm796, %v730, 0
        %v918 = vsel %vm796, %v731, 0
        %v921 = vsel %vm796, %v732, 0
        %v924 = vsel %vm796, %v733, 0
        %v927 = vsel %vm796, %v734, 0
        %v930 = vsel %vm796, %v735, 0
        %v933 = vsel %vm796, %v736, 0
        %v936 = vsel %vm796, %v737, 0
        %v939 = vsel %vm796, %v738, 0
        %v942 = vsel %vm796, %v739, 0
        %v945 = vsel %vm796, %v740, 0
        %v948 = vsel %vm796, %v741, 0
        %v951 = vsel %vm796, %v742, 0
        %v954 = vsel %vm796, %v743, 0
        %v957 = vsel %vm796, %v744, 0
        %v960 = vsel %vm796, %v745, 0
        %v963 = vsel %vm796, %v746, 0
        %v966 = vsel %vm796, %v747, 0
        %v969 = vsel %vm796, %v748, 0
        %v972 = vsel %vm796, %v749, 0
        %v975 = vsel %vm796, %v750, 0
        %v978 = vsel %vm796, %v751, 0
        %v981 = vsel %vm796, %v752, 0
        %v984 = vsel %vm796, %v753, 0
        %v987 = vsel %vm796, %v754, 0
        %vm989 = vcmask 1045504
        %v991 = vsel %vm989, %v789, 0
        %993 = vmatprep.subr.bf16.mxu0 0
        %994 = vmatpush1.bf16.msra.mxu0 0
        %995 = vmatprep.subr.bf16.mxu0 0
        %996 = vmatpush1.bf16.msra.mxu0 %v991
        %997 = vmatprep.subr.bf16.mxu0 0
        %998 = vmatpush1.bf16.msra.mxu0 %v788
        %999 = vmatprep.subr.bf16.mxu0 0
        %1000 = vmatpush1.bf16.msra.mxu0 %v787
        %1001 = vmatprep.subr.bf16.mxu0 0
        %1002 = vmatpush1.bf16.msra.mxu0 %v786
        %1003 = vmatprep.subr.bf16.mxu0 0
        %1004 = vmatpush1.bf16.msra.mxu0 %v785
        %1005 = vmatprep.subr.bf16.mxu0 0
        %1006 = vmatpush1.bf16.msra.mxu0 %v784
        %1007 = vmatprep.subr.bf16.mxu0 0
        %1008 = vmatpush1.bf16.msra.mxu0 %v783
        %1009 = vmatprep.subr.bf16.mxu0 0
        %1010 = vmatpush2.bf16.msra.mxu0 0
        %1011 = vmatprep.subr.bf16.mxu0 0
        %1012 = vmatpush2.bf16.msra.mxu0 0
        %1013 = vmatprep.subr.bf16.mxu0 0
        %1014 = vmatpush2.bf16.msra.mxu0 0
        %1015 = vmatprep.subr.bf16.mxu0 0
        %1016 = vmatpush2.bf16.msra.mxu0 0
        %1017 = vmatprep.subr.bf16.mxu0 0
        %1018 = vmatpush2.bf16.msra.mxu0 0
        %1019 = vmatprep.subr.bf16.mxu0 0
        %1020 = vmatpush2.bf16.msra.mxu0 0
        %1021 = vmatprep.subr.bf16.mxu0 0
        %1022 = vmatpush2.bf16.msra.mxu0 0
        %1023 = vmatprep.subr.bf16.mxu0 0
        %1024 = vmatpush2.bf16.msra.mxu0 0
        %1025 = vmatprep.mubr.bf16.mxu0 0
        %1026 = vmatmul.mubr.bf16.gmra.mxu0 %v798
        %v1027 = vpop.f32.mrf.mxu0
        %v1028 = vadd.f32 0.0, %v1027
        %v1029 = vpop.f32.mrf.mxu0
        %v1030 = vpop.f32.mrf.mxu0
        %v1031 = vadd.f32 0.0, %v1030
        %v1032 = vpop.f32.mrf.mxu0
        %1033 = vmatprep.mubr.bf16.mxu0 0
        %1034 = vmatmul.mubr.bf16.gmra.mxu0 %v801
        %v1035 = vpop.f32.mrf.mxu0
        %v1036 = vadd.f32 0.0, %v1035
        %v1037 = vpop.f32.mrf.mxu0
        %v1038 = vpop.f32.mrf.mxu0
        %v1039 = vadd.f32 0.0, %v1038
        %v1040 = vpop.f32.mrf.mxu0
        %1041 = vmatprep.mubr.bf16.mxu0 0
        %1042 = vmatmul.mubr.bf16.gmra.mxu0 %v804
        %v1043 = vpop.f32.mrf.mxu0
        %v1044 = vadd.f32 0.0, %v1043
        %v1045 = vpop.f32.mrf.mxu0
        %v1046 = vpop.f32.mrf.mxu0
        %v1047 = vadd.f32 0.0, %v1046
        %v1048 = vpop.f32.mrf.mxu0
        %1049 = vmatprep.mubr.bf16.mxu0 0
        %1050 = vmatmul.mubr.bf16.gmra.mxu0 %v807
        %v1051 = vpop.f32.mrf.mxu0
        %v1052 = vadd.f32 0.0, %v1051
        %v1053 = vpop.f32.mrf.mxu0
        %v1054 = vpop.f32.mrf.mxu0
        %v1055 = vadd.f32 0.0, %v1054
        %v1056 = vpop.f32.mrf.mxu0
        %1057 = vmatprep.mubr.bf16.mxu0 0
        %1058 = vmatmul.mubr.bf16.gmra.mxu0 %v810
        %v1059 = vpop.f32.mrf.mxu0
        %v1060 = vadd.f32 0.0, %v1059
        %v1061 = vpop.f32.mrf.mxu0
        %v1062 = vpop.f32.mrf.mxu0
        %v1063 = vadd.f32 0.0, %v1062
        %v1064 = vpop.f32.mrf.mxu0
        %1065 = vmatprep.mubr.bf16.mxu0 0
        %1066 = vmatmul.mubr.bf16.gmra.mxu0 %v813
        %v1067 = vpop.f32.mrf.mxu0
        %v1068 = vadd.f32 0.0, %v1067
        %v1069 = vpop.f32.mrf.mxu0
        %v1070 = vpop.f32.mrf.mxu0
        %v1071 = vadd.f32 0.0, %v1070
        %v1072 = vpop.f32.mrf.mxu0
        %1073 = vmatprep.mubr.bf16.mxu0 0
        %1074 = vmatmul.mubr.bf16.gmra.mxu0 %v816
        %v1075 = vpop.f32.mrf.mxu0
        %v1076 = vadd.f32 0.0, %v1075
        %v1077 = vpop.f32.mrf.mxu0
        %v1078 = vpop.f32.mrf.mxu0
        %v1079 = vadd.f32 0.0, %v1078
        %v1080 = vpop.f32.mrf.mxu0
        %1081 = vmatprep.mubr.bf16.mxu0 0
        %1082 = vmatmul.mubr.bf16.gmra.mxu0 %v819
        %v1083 = vpop.f32.mrf.mxu0
        %v1084 = vadd.f32 0.0, %v1083
        %v1085 = vpop.f32.mrf.mxu0
        %v1086 = vpop.f32.mrf.mxu0
        %v1087 = vadd.f32 0.0, %v1086
        %v1088 = vpop.f32.mrf.mxu0
        %1089 = vmatprep.mubr.bf16.mxu0 0
        %1090 = vmatmul.mubr.bf16.gmra.mxu0 %v822
        %v1091 = vpop.f32.mrf.mxu0
        %v1092 = vadd.f32 0.0, %v1091
        %v1093 = vpop.f32.mrf.mxu0
        %v1094 = vpop.f32.mrf.mxu0
        %v1095 = vadd.f32 0.0, %v1094
        %v1096 = vpop.f32.mrf.mxu0
        %1097 = vmatprep.mubr.bf16.mxu0 0
        %1098 = vmatmul.mubr.bf16.gmra.mxu0 %v825
        %v1099 = vpop.f32.mrf.mxu0
        %v1100 = vadd.f32 0.0, %v1099
        %v1101 = vpop.f32.mrf.mxu0
        %v1102 = vpop.f32.mrf.mxu0
        %v1103 = vadd.f32 0.0, %v1102
        %v1104 = vpop.f32.mrf.mxu0
        %1105 = vmatprep.mubr.bf16.mxu0 0
        %1106 = vmatmul.mubr.bf16.gmra.mxu0 %v828
        %v1107 = vpop.f32.mrf.mxu0
        %v1108 = vadd.f32 0.0, %v1107
        %v1109 = vpop.f32.mrf.mxu0
        %v1110 = vpop.f32.mrf.mxu0
        %v1111 = vadd.f32 0.0, %v1110
        %v1112 = vpop.f32.mrf.mxu0
        %1113 = vmatprep.mubr.bf16.mxu0 0
        %1114 = vmatmul.mubr.bf16.gmra.mxu0 %v831
        %v1115 = vpop.f32.mrf.mxu0
        %v1116 = vadd.f32 0.0, %v1115
        %v1117 = vpop.f32.mrf.mxu0
        %v1118 = vpop.f32.mrf.mxu0
        %v1119 = vadd.f32 0.0, %v1118
        %v1120 = vpop.f32.mrf.mxu0
        %1121 = vmatprep.mubr.bf16.mxu0 0
        %1122 = vmatmul.mubr.bf16.gmra.mxu0 %v834
        %v1123 = vpop.f32.mrf.mxu0
        %v1124 = vadd.f32 0.0, %v1123
        %v1125 = vpop.f32.mrf.mxu0
        %v1126 = vpop.f32.mrf.mxu0
        %v1127 = vadd.f32 0.0, %v1126
        %v1128 = vpop.f32.mrf.mxu0
        %1129 = vmatprep.mubr.bf16.mxu0 0
        %1130 = vmatmul.mubr.bf16.gmra.mxu0 %v837
        %v1131 = vpop.f32.mrf.mxu0
        %v1132 = vadd.f32 0.0, %v1131
        %v1133 = vpop.f32.mrf.mxu0
        %v1134 = vpop.f32.mrf.mxu0
        %v1135 = vadd.f32 0.0, %v1134
        %v1136 = vpop.f32.mrf.mxu0
        %1137 = vmatprep.mubr.bf16.mxu0 0
        %1138 = vmatmul.mubr.bf16.gmra.mxu0 %v840
        %v1139 = vpop.f32.mrf.mxu0
        %v1140 = vadd.f32 0.0, %v1139
        %v1141 = vpop.f32.mrf.mxu0
        %v1142 = vpop.f32.mrf.mxu0
        %v1143 = vadd.f32 0.0, %v1142
        %v1144 = vpop.f32.mrf.mxu0
        %1145 = vmatprep.mubr.bf16.mxu0 0
        %1146 = vmatmul.mubr.bf16.gmra.mxu0 %v843
        %v1147 = vpop.f32.mrf.mxu0
        %v1148 = vadd.f32 0.0, %v1147
        %v1149 = vpop.f32.mrf.mxu0
        %v1150 = vpop.f32.mrf.mxu0
        %v1151 = vadd.f32 0.0, %v1150
        %v1152 = vpop.f32.mrf.mxu0
        %1153 = vmatprep.mubr.bf16.mxu0 0
        %1154 = vmatmul.mubr.bf16.gmra.mxu0 %v846
        %v1155 = vpop.f32.mrf.mxu0
        %v1156 = vadd.f32 0.0, %v1155
        %v1157 = vpop.f32.mrf.mxu0
        %v1158 = vpop.f32.mrf.mxu0
        %v1159 = vadd.f32 0.0, %v1158
        %v1160 = vpop.f32.mrf.mxu0
        %1161 = vmatprep.mubr.bf16.mxu0 0
        %1162 = vmatmul.mubr.bf16.gmra.mxu0 %v849
        %v1163 = vpop.f32.mrf.mxu0
        %v1164 = vadd.f32 0.0, %v1163
        %v1165 = vpop.f32.mrf.mxu0
        %v1166 = vpop.f32.mrf.mxu0
        %v1167 = vadd.f32 0.0, %v1166
        %v1168 = vpop.f32.mrf.mxu0
        %1169 = vmatprep.mubr.bf16.mxu0 0
        %1170 = vmatmul.mubr.bf16.gmra.mxu0 %v852
        %v1171 = vpop.f32.mrf.mxu0
        %v1172 = vadd.f32 0.0, %v1171
        %v1173 = vpop.f32.mrf.mxu0
        %v1174 = vpop.f32.mrf.mxu0
        %v1175 = vadd.f32 0.0, %v1174
        %v1176 = vpop.f32.mrf.mxu0
        %1177 = vmatprep.mubr.bf16.mxu0 0
        %1178 = vmatmul.mubr.bf16.gmra.mxu0 %v855
        %v1179 = vpop.f32.mrf.mxu0
        %v1180 = vadd.f32 0.0, %v1179
        %v1181 = vpop.f32.mrf.mxu0
        %v1182 = vpop.f32.mrf.mxu0
        %v1183 = vadd.f32 0.0, %v1182
        %v1184 = vpop.f32.mrf.mxu0
        %1185 = vmatprep.mubr.bf16.mxu0 0
        %1186 = vmatmul.mubr.bf16.gmra.mxu0 %v858
        %v1187 = vpop.f32.mrf.mxu0
        %v1188 = vadd.f32 0.0, %v1187
        %v1189 = vpop.f32.mrf.mxu0
        %v1190 = vpop.f32.mrf.mxu0
        %v1191 = vadd.f32 0.0, %v1190
        %v1192 = vpop.f32.mrf.mxu0
        %1193 = vmatprep.mubr.bf16.mxu0 0
        %1194 = vmatmul.mubr.bf16.gmra.mxu0 %v861
        %v1195 = vpop.f32.mrf.mxu0
        %v1196 = vadd.f32 0.0, %v1195
        %v1197 = vpop.f32.mrf.mxu0
        %v1198 = vpop.f32.mrf.mxu0
        %v1199 = vadd.f32 0.0, %v1198
        %v1200 = vpop.f32.mrf.mxu0
        %1201 = vmatprep.mubr.bf16.mxu0 0
        %1202 = vmatmul.mubr.bf16.gmra.mxu0 %v864
        %v1203 = vpop.f32.mrf.mxu0
        %v1204 = vadd.f32 0.0, %v1203
        %v1205 = vpop.f32.mrf.mxu0
        %v1206 = vpop.f32.mrf.mxu0
        %v1207 = vadd.f32 0.0, %v1206
        %v1208 = vpop.f32.mrf.mxu0
        %1209 = vmatprep.mubr.bf16.mxu0 0
        %1210 = vmatmul.mubr.bf16.gmra.mxu0 %v867
        %v1211 = vpop.f32.mrf.mxu0
        %v1212 = vadd.f32 0.0, %v1211
        %v1213 = vpop.f32.mrf.mxu0
        %v1214 = vpop.f32.mrf.mxu0
        %v1215 = vadd.f32 0.0, %v1214
        %v1216 = vpop.f32.mrf.mxu0
        %1217 = vmatprep.mubr.bf16.mxu0 0
        %1218 = vmatmul.mubr.bf16.gmra.mxu0 %v870
        %v1219 = vpop.f32.mrf.mxu0
        %v1220 = vadd.f32 0.0, %v1219
        %v1221 = vpop.f32.mrf.mxu0
        %v1222 = vpop.f32.mrf.mxu0
        %v1223 = vadd.f32 0.0, %v1222
        %v1224 = vpop.f32.mrf.mxu0
        %1225 = vmatprep.mubr.bf16.mxu0 0
        %1226 = vmatmul.mubr.bf16.gmra.mxu0 %v873
        %v1227 = vpop.f32.mrf.mxu0
        %v1228 = vadd.f32 0.0, %v1227
        %v1229 = vpop.f32.mrf.mxu0
        %v1230 = vpop.f32.mrf.mxu0
        %v1231 = vadd.f32 0.0, %v1230
        %v1232 = vpop.f32.mrf.mxu0
        %1233 = vmatprep.mubr.bf16.mxu0 0
        %1234 = vmatmul.mubr.bf16.gmra.mxu0 %v876
        %v1235 = vpop.f32.mrf.mxu0
        %v1236 = vadd.f32 0.0, %v1235
        %v1237 = vpop.f32.mrf.mxu0
        %v1238 = vpop.f32.mrf.mxu0
        %v1239 = vadd.f32 0.0, %v1238
        %v1240 = vpop.f32.mrf.mxu0
        %1241 = vmatprep.mubr.bf16.mxu0 0
        %1242 = vmatmul.mubr.bf16.gmra.mxu0 %v879
        %v1243 = vpop.f32.mrf.mxu0
        %v1244 = vadd.f32 0.0, %v1243
        %v1245 = vpop.f32.mrf.mxu0
        %v1246 = vpop.f32.mrf.mxu0
        %v1247 = vadd.f32 0.0, %v1246
        %v1248 = vpop.f32.mrf.mxu0
        %1249 = vmatprep.mubr.bf16.mxu0 0
        %1250 = vmatmul.mubr.bf16.gmra.mxu0 %v882
        %v1251 = vpop.f32.mrf.mxu0
        %v1252 = vadd.f32 0.0, %v1251
        %v1253 = vpop.f32.mrf.mxu0
        %v1254 = vpop.f32.mrf.mxu0
        %v1255 = vadd.f32 0.0, %v1254
        %v1256 = vpop.f32.mrf.mxu0
        %1257 = vmatprep.mubr.bf16.mxu0 0
        %1258 = vmatmul.mubr.bf16.gmra.mxu0 %v885
        %v1259 = vpop.f32.mrf.mxu0
        %v1260 = vadd.f32 0.0, %v1259
        %v1261 = vpop.f32.mrf.mxu0
        %v1262 = vpop.f32.mrf.mxu0
        %v1263 = vadd.f32 0.0, %v1262
        %v1264 = vpop.f32.mrf.mxu0
        %1265 = vmatprep.mubr.bf16.mxu0 0
        %1266 = vmatmul.mubr.bf16.gmra.mxu0 %v888
        %v1267 = vpop.f32.mrf.mxu0
        %v1268 = vadd.f32 0.0, %v1267
        %v1269 = vpop.f32.mrf.mxu0
        %v1270 = vpop.f32.mrf.mxu0
        %v1271 = vadd.f32 0.0, %v1270
        %v1272 = vpop.f32.mrf.mxu0
        %1273 = vmatprep.mubr.bf16.mxu0 0
        %1274 = vmatmul.mubr.bf16.gmra.mxu0 %v891
        %v1275 = vpop.f32.mrf.mxu0
        %v1276 = vadd.f32 0.0, %v1275
        %v1277 = vpop.f32.mrf.mxu0
        %v1278 = vpop.f32.mrf.mxu0
        %v1279 = vadd.f32 0.0, %v1278
        %v1280 = vpop.f32.mrf.mxu0
        %1281 = vmatprep.mubr.bf16.mxu0 0
        %1282 = vmatmul.mubr.bf16.gmra.mxu0 %v894
        %v1283 = vpop.f32.mrf.mxu0
        %v1284 = vadd.f32 0.0, %v1283
        %v1285 = vpop.f32.mrf.mxu0
        %v1286 = vpop.f32.mrf.mxu0
        %v1287 = vadd.f32 0.0, %v1286
        %v1288 = vpop.f32.mrf.mxu0
        %1289 = vmatprep.mubr.bf16.mxu0 0
        %1290 = vmatmul.mubr.bf16.gmra.mxu0 %v897
        %v1291 = vpop.f32.mrf.mxu0
        %v1292 = vadd.f32 0.0, %v1291
        %v1293 = vpop.f32.mrf.mxu0
        %v1294 = vpop.f32.mrf.mxu0
        %v1295 = vadd.f32 0.0, %v1294
        %v1296 = vpop.f32.mrf.mxu0
        %1297 = vmatprep.mubr.bf16.mxu0 0
        %1298 = vmatmul.mubr.bf16.gmra.mxu0 %v900
        %v1299 = vpop.f32.mrf.mxu0
        %v1300 = vadd.f32 0.0, %v1299
        %v1301 = vpop.f32.mrf.mxu0
        %v1302 = vpop.f32.mrf.mxu0
        %v1303 = vadd.f32 0.0, %v1302
        %v1304 = vpop.f32.mrf.mxu0
        %1305 = vmatprep.mubr.bf16.mxu0 0
        %1306 = vmatmul.mubr.bf16.gmra.mxu0 %v903
        %v1307 = vpop.f32.mrf.mxu0
        %v1308 = vadd.f32 0.0, %v1307
        %v1309 = vpop.f32.mrf.mxu0
        %v1310 = vpop.f32.mrf.mxu0
        %v1311 = vadd.f32 0.0, %v1310
        %v1312 = vpop.f32.mrf.mxu0
        %1313 = vmatprep.mubr.bf16.mxu0 0
        %1314 = vmatmul.mubr.bf16.gmra.mxu0 %v906
        %v1315 = vpop.f32.mrf.mxu0
        %v1316 = vadd.f32 0.0, %v1315
        %v1317 = vpop.f32.mrf.mxu0
        %v1318 = vpop.f32.mrf.mxu0
        %v1319 = vadd.f32 0.0, %v1318
        %v1320 = vpop.f32.mrf.mxu0
        %1321 = vmatprep.mubr.bf16.mxu0 0
        %1322 = vmatmul.mubr.bf16.gmra.mxu0 %v909
        %v1323 = vpop.f32.mrf.mxu0
        %v1324 = vadd.f32 0.0, %v1323
        %v1325 = vpop.f32.mrf.mxu0
        %v1326 = vpop.f32.mrf.mxu0
        %v1327 = vadd.f32 0.0, %v1326
        %v1328 = vpop.f32.mrf.mxu0
        %1329 = vmatprep.mubr.bf16.mxu0 0
        %1330 = vmatmul.mubr.bf16.gmra.mxu0 %v912
        %v1331 = vpop.f32.mrf.mxu0
        %v1332 = vadd.f32 0.0, %v1331
        %v1333 = vpop.f32.mrf.mxu0
        %v1334 = vpop.f32.mrf.mxu0
        %v1335 = vadd.f32 0.0, %v1334
        %v1336 = vpop.f32.mrf.mxu0
        %1337 = vmatprep.mubr.bf16.mxu0 0
        %1338 = vmatmul.mubr.bf16.gmra.mxu0 %v915
        %v1339 = vpop.f32.mrf.mxu0
        %v1340 = vadd.f32 0.0, %v1339
        %v1341 = vpop.f32.mrf.mxu0
        %v1342 = vpop.f32.mrf.mxu0
        %v1343 = vadd.f32 0.0, %v1342
        %v1344 = vpop.f32.mrf.mxu0
        %1345 = vmatprep.mubr.bf16.mxu0 0
        %1346 = vmatmul.mubr.bf16.gmra.mxu0 %v918
        %v1347 = vpop.f32.mrf.mxu0
        %v1348 = vadd.f32 0.0, %v1347
        %v1349 = vpop.f32.mrf.mxu0
        %v1350 = vpop.f32.mrf.mxu0
        %v1351 = vadd.f32 0.0, %v1350
        %v1352 = vpop.f32.mrf.mxu0
        %1353 = vmatprep.mubr.bf16.mxu0 0
        %1354 = vmatmul.mubr.bf16.gmra.mxu0 %v921
        %v1355 = vpop.f32.mrf.mxu0
        %v1356 = vadd.f32 0.0, %v1355
        %v1357 = vpop.f32.mrf.mxu0
        %v1358 = vpop.f32.mrf.mxu0
        %v1359 = vadd.f32 0.0, %v1358
        %v1360 = vpop.f32.mrf.mxu0
        %1361 = vmatprep.mubr.bf16.mxu0 0
        %1362 = vmatmul.mubr.bf16.gmra.mxu0 %v924
        %v1363 = vpop.f32.mrf.mxu0
        %v1364 = vadd.f32 0.0, %v1363
        %v1365 = vpop.f32.mrf.mxu0
        %v1366 = vpop.f32.mrf.mxu0
        %v1367 = vadd.f32 0.0, %v1366
        %v1368 = vpop.f32.mrf.mxu0
        %1369 = vmatprep.mubr.bf16.mxu0 0
        %1370 = vmatmul.mubr.bf16.gmra.mxu0 %v927
        %v1371 = vpop.f32.mrf.mxu0
        %v1372 = vadd.f32 0.0, %v1371
        %v1373 = vpop.f32.mrf.mxu0
        %v1374 = vpop.f32.mrf.mxu0
        %v1375 = vadd.f32 0.0, %v1374
        %v1376 = vpop.f32.mrf.mxu0
        %1377 = vmatprep.mubr.bf16.mxu0 0
        %1378 = vmatmul.mubr.bf16.gmra.mxu0 %v930
        %v1379 = vpop.f32.mrf.mxu0
        %v1380 = vadd.f32 0.0, %v1379
        %v1381 = vpop.f32.mrf.mxu0
        %v1382 = vpop.f32.mrf.mxu0
        %v1383 = vadd.f32 0.0, %v1382
        %v1384 = vpop.f32.mrf.mxu0
        %1385 = vmatprep.mubr.bf16.mxu0 0
        %1386 = vmatmul.mubr.bf16.gmra.mxu0 %v933
        %v1387 = vpop.f32.mrf.mxu0
        %v1388 = vadd.f32 0.0, %v1387
        %v1389 = vpop.f32.mrf.mxu0
        %v1390 = vpop.f32.mrf.mxu0
        %v1391 = vadd.f32 0.0, %v1390
        %v1392 = vpop.f32.mrf.mxu0
        %1393 = vmatprep.mubr.bf16.mxu0 0
        %1394 = vmatmul.mubr.bf16.gmra.mxu0 %v936
        %v1395 = vpop.f32.mrf.mxu0
        %v1396 = vadd.f32 0.0, %v1395
        %v1397 = vpop.f32.mrf.mxu0
        %v1398 = vpop.f32.mrf.mxu0
        %v1399 = vadd.f32 0.0, %v1398
        %v1400 = vpop.f32.mrf.mxu0
        %1401 = vmatprep.mubr.bf16.mxu0 0
        %1402 = vmatmul.mubr.bf16.gmra.mxu0 %v939
        %v1403 = vpop.f32.mrf.mxu0
        %v1404 = vadd.f32 0.0, %v1403
        %v1405 = vpop.f32.mrf.mxu0
        %v1406 = vpop.f32.mrf.mxu0
        %v1407 = vadd.f32 0.0, %v1406
        %v1408 = vpop.f32.mrf.mxu0
        %1409 = vmatprep.mubr.bf16.mxu0 0
        %1410 = vmatmul.mubr.bf16.gmra.mxu0 %v942
        %v1411 = vpop.f32.mrf.mxu0
        %v1412 = vadd.f32 0.0, %v1411
        %v1413 = vpop.f32.mrf.mxu0
        %v1414 = vpop.f32.mrf.mxu0
        %v1415 = vadd.f32 0.0, %v1414
        %v1416 = vpop.f32.mrf.mxu0
        %1417 = vmatprep.mubr.bf16.mxu0 0
        %1418 = vmatmul.mubr.bf16.gmra.mxu0 %v945
        %v1419 = vpop.f32.mrf.mxu0
        %v1420 = vadd.f32 0.0, %v1419
        %v1421 = vpop.f32.mrf.mxu0
        %v1422 = vpop.f32.mrf.mxu0
        %v1423 = vadd.f32 0.0, %v1422
        %v1424 = vpop.f32.mrf.mxu0
        %1425 = vmatprep.mubr.bf16.mxu0 0
        %1426 = vmatmul.mubr.bf16.gmra.mxu0 %v948
        %v1427 = vpop.f32.mrf.mxu0
        %v1428 = vadd.f32 0.0, %v1427
        %v1429 = vpop.f32.mrf.mxu0
        %v1430 = vpop.f32.mrf.mxu0
        %v1431 = vadd.f32 0.0, %v1430
        %v1432 = vpop.f32.mrf.mxu0
        %1433 = vmatprep.mubr.bf16.mxu0 0
        %1434 = vmatmul.mubr.bf16.gmra.mxu0 %v951
        %v1435 = vpop.f32.mrf.mxu0
        %v1436 = vadd.f32 0.0, %v1435
        %v1437 = vpop.f32.mrf.mxu0
        %v1438 = vpop.f32.mrf.mxu0
        %v1439 = vadd.f32 0.0, %v1438
        %v1440 = vpop.f32.mrf.mxu0
        %1441 = vmatprep.mubr.bf16.mxu0 0
        %1442 = vmatmul.mubr.bf16.gmra.mxu0 %v954
        %v1443 = vpop.f32.mrf.mxu0
        %v1444 = vadd.f32 0.0, %v1443
        %v1445 = vpop.f32.mrf.mxu0
        %v1446 = vpop.f32.mrf.mxu0
        %v1447 = vadd.f32 0.0, %v1446
        %v1448 = vpop.f32.mrf.mxu0
        %1449 = vmatprep.mubr.bf16.mxu0 0
        %1450 = vmatmul.mubr.bf16.gmra.mxu0 %v957
        %v1451 = vpop.f32.mrf.mxu0
        %v1452 = vadd.f32 0.0, %v1451
        %v1453 = vpop.f32.mrf.mxu0
        %v1454 = vpop.f32.mrf.mxu0
        %v1455 = vadd.f32 0.0, %v1454
        %v1456 = vpop.f32.mrf.mxu0
        %1457 = vmatprep.mubr.bf16.mxu0 0
        %1458 = vmatmul.mubr.bf16.gmra.mxu0 %v960
        %v1459 = vpop.f32.mrf.mxu0
        %v1460 = vadd.f32 0.0, %v1459
        %v1461 = vpop.f32.mrf.mxu0
        %v1462 = vpop.f32.mrf.mxu0
        %v1463 = vadd.f32 0.0, %v1462
        %v1464 = vpop.f32.mrf.mxu0
        %1465 = vmatprep.mubr.bf16.mxu0 0
        %1466 = vmatmul.mubr.bf16.gmra.mxu0 %v963
        %v1467 = vpop.f32.mrf.mxu0
        %v1468 = vadd.f32 0.0, %v1467
        %v1469 = vpop.f32.mrf.mxu0
        %v1470 = vpop.f32.mrf.mxu0
        %v1471 = vadd.f32 0.0, %v1470
        %v1472 = vpop.f32.mrf.mxu0
        %1473 = vmatprep.mubr.bf16.mxu0 0
        %1474 = vmatmul.mubr.bf16.gmra.mxu0 %v966
        %v1475 = vpop.f32.mrf.mxu0
        %v1476 = vadd.f32 0.0, %v1475
        %v1477 = vpop.f32.mrf.mxu0
        %v1478 = vpop.f32.mrf.mxu0
        %v1479 = vadd.f32 0.0, %v1478
        %v1480 = vpop.f32.mrf.mxu0
        %1481 = vmatprep.mubr.bf16.mxu0 0
        %1482 = vmatmul.mubr.bf16.gmra.mxu0 %v969
        %v1483 = vpop.f32.mrf.mxu0
        %v1484 = vadd.f32 0.0, %v1483
        %v1485 = vpop.f32.mrf.mxu0
        %v1486 = vpop.f32.mrf.mxu0
        %v1487 = vadd.f32 0.0, %v1486
        %v1488 = vpop.f32.mrf.mxu0
        %1489 = vmatprep.mubr.bf16.mxu0 0
        %1490 = vmatmul.mubr.bf16.gmra.mxu0 %v972
        %v1491 = vpop.f32.mrf.mxu0
        %v1492 = vadd.f32 0.0, %v1491
        %v1493 = vpop.f32.mrf.mxu0
        %v1494 = vpop.f32.mrf.mxu0
        %v1495 = vadd.f32 0.0, %v1494
        %v1496 = vpop.f32.mrf.mxu0
        %1497 = vmatprep.mubr.bf16.mxu0 0
        %1498 = vmatmul.mubr.bf16.gmra.mxu0 %v975
        %v1499 = vpop.f32.mrf.mxu0
        %v1500 = vadd.f32 0.0, %v1499
        %v1501 = vpop.f32.mrf.mxu0
        %v1502 = vpop.f32.mrf.mxu0
        %v1503 = vadd.f32 0.0, %v1502
        %v1504 = vpop.f32.mrf.mxu0
        %1505 = vmatprep.mubr.bf16.mxu0 0
        %1506 = vmatmul.mubr.bf16.gmra.mxu0 %v978
        %v1507 = vpop.f32.mrf.mxu0
        %v1508 = vadd.f32 0.0, %v1507
        %v1509 = vpop.f32.mrf.mxu0
        %v1510 = vpop.f32.mrf.mxu0
        %v1511 = vadd.f32 0.0, %v1510
        %v1512 = vpop.f32.mrf.mxu0
        %1513 = vmatprep.mubr.bf16.mxu0 0
        %1514 = vmatmul.mubr.bf16.gmra.mxu0 %v981
        %v1515 = vpop.f32.mrf.mxu0
        %v1516 = vadd.f32 0.0, %v1515
        %v1517 = vpop.f32.mrf.mxu0
        %v1518 = vpop.f32.mrf.mxu0
        %v1519 = vadd.f32 0.0, %v1518
        %v1520 = vpop.f32.mrf.mxu0
        %1521 = vmatprep.mubr.bf16.mxu0 0
        %1522 = vmatmul.mubr.bf16.gmra.mxu0 %v984
        %v1523 = vpop.f32.mrf.mxu0
        %v1524 = vadd.f32 0.0, %v1523
        %v1525 = vpop.f32.mrf.mxu0
        %v1526 = vpop.f32.mrf.mxu0
        %v1527 = vadd.f32 0.0, %v1526
        %v1528 = vpop.f32.mrf.mxu0
        %1529 = vmatprep.mubr.bf16.mxu0 0
        %1530 = vmatmul.mubr.bf16.gmra.mxu0 %v987
        %v1531 = vpop.f32.mrf.mxu0
        %v1532 = vadd.f32 0.0, %v1531
        %v1533 = vpop.f32.mrf.mxu0
        %v1534 = vpop.f32.mrf.mxu0
        %v1535 = vadd.f32 0.0, %v1534
        %v1536 = vpop.f32.mrf.mxu0
        %1537 = vdwg.mxu0
        %v1538 = vld [vmem:[%s2] sm:$0x1]
        %v1540 = vlaneseq
        %v1541 = vshrl.u32 %v1540, 7
        %v1542 = vsub.s32 0, %v1541
        %v1543 = vrot.slane %v1538, %v1542
        %v1545 = vmul.f32 %v1028, %v1543
        %v1546 = vmul.f32 %v1031, %v1543
        %v1547 = vmul.f32 %v1036, %v1543
        %v1548 = vmul.f32 %v1039, %v1543
        %v1549 = vmul.f32 %v1044, %v1543
        %v1550 = vmul.f32 %v1047, %v1543
        %v1551 = vmul.f32 %v1052, %v1543
        %v1552 = vmul.f32 %v1055, %v1543
        %v1553 = vmul.f32 %v1060, %v1543
        %v1554 = vmul.f32 %v1063, %v1543
        %v1555 = vmul.f32 %v1068, %v1543
        %v1556 = vmul.f32 %v1071, %v1543
        %v1557 = vmul.f32 %v1076, %v1543
        %v1558 = vmul.f32 %v1079, %v1543
        %v1559 = vmul.f32 %v1084, %v1543
        %v1560 = vmul.f32 %v1087, %v1543
        %v1561 = vmul.f32 %v1092, %v1543
        %v1562 = vmul.f32 %v1095, %v1543
        %v1563 = vmul.f32 %v1100, %v1543
        %v1564 = vmul.f32 %v1103, %v1543
        %v1565 = vmul.f32 %v1108, %v1543
        %v1566 = vmul.f32 %v1111, %v1543
        %v1567 = vmul.f32 %v1116, %v1543
        %v1568 = vmul.f32 %v1119, %v1543
        %v1569 = vmul.f32 %v1124, %v1543
        %v1570 = vmul.f32 %v1127, %v1543
        %v1571 = vmul.f32 %v1132, %v1543
        %v1572 = vmul.f32 %v1135, %v1543
        %v1573 = vmul.f32 %v1140, %v1543
        %v1574 = vmul.f32 %v1143, %v1543
        %v1575 = vmul.f32 %v1148, %v1543
        %v1576 = vmul.f32 %v1151, %v1543
        %v1577 = vmul.f32 %v1156, %v1543
        %v1578 = vmul.f32 %v1159, %v1543
        %v1579 = vmul.f32 %v1164, %v1543
        %v1580 = vmul.f32 %v1167, %v1543
        %v1581 = vmul.f32 %v1172, %v1543
        %v1582 = vmul.f32 %v1175, %v1543
        %v1583 = vmul.f32 %v1180, %v1543
        %v1584 = vmul.f32 %v1183, %v1543
        %v1585 = vmul.f32 %v1188, %v1543
        %v1586 = vmul.f32 %v1191, %v1543
        %v1587 = vmul.f32 %v1196, %v1543
        %v1588 = vmul.f32 %v1199, %v1543
        %v1589 = vmul.f32 %v1204, %v1543
        %v1590 = vmul.f32 %v1207, %v1543
        %v1591 = vmul.f32 %v1212, %v1543
        %v1592 = vmul.f32 %v1215, %v1543
        %v1593 = vmul.f32 %v1220, %v1543
        %v1594 = vmul.f32 %v1223, %v1543
        %v1595 = vmul.f32 %v1228, %v1543
        %v1596 = vmul.f32 %v1231, %v1543
        %v1597 = vmul.f32 %v1236, %v1543
        %v1598 = vmul.f32 %v1239, %v1543
        %v1599 = vmul.f32 %v1244, %v1543
        %v1600 = vmul.f32 %v1247, %v1543
        %v1601 = vmul.f32 %v1252, %v1543
        %v1602 = vmul.f32 %v1255, %v1543
        %v1603 = vmul.f32 %v1260, %v1543
        %v1604 = vmul.f32 %v1263, %v1543
        %v1605 = vmul.f32 %v1268, %v1543
        %v1606 = vmul.f32 %v1271, %v1543
        %v1607 = vmul.f32 %v1276, %v1543
        %v1608 = vmul.f32 %v1279, %v1543
        %v1609 = vmul.f32 %v1284, %v1543
        %v1610 = vmul.f32 %v1287, %v1543
        %v1611 = vmul.f32 %v1292, %v1543
        %v1612 = vmul.f32 %v1295, %v1543
        %v1613 = vmul.f32 %v1300, %v1543
        %v1614 = vmul.f32 %v1303, %v1543
        %v1615 = vmul.f32 %v1308, %v1543
        %v1616 = vmul.f32 %v1311, %v1543
        %v1617 = vmul.f32 %v1316, %v1543
        %v1618 = vmul.f32 %v1319, %v1543
        %v1619 = vmul.f32 %v1324, %v1543
        %v1620 = vmul.f32 %v1327, %v1543
        %v1621 = vmul.f32 %v1332, %v1543
        %v1622 = vmul.f32 %v1335, %v1543
        %v1623 = vmul.f32 %v1340, %v1543
        %v1624 = vmul.f32 %v1343, %v1543
        %v1625 = vmul.f32 %v1348, %v1543
        %v1626 = vmul.f32 %v1351, %v1543
        %v1627 = vmul.f32 %v1356, %v1543
        %v1628 = vmul.f32 %v1359, %v1543
        %v1629 = vmul.f32 %v1364, %v1543
        %v1630 = vmul.f32 %v1367, %v1543
        %v1631 = vmul.f32 %v1372, %v1543
        %v1632 = vmul.f32 %v1375, %v1543
        %v1633 = vmul.f32 %v1380, %v1543
        %v1634 = vmul.f32 %v1383, %v1543
        %v1635 = vmul.f32 %v1388, %v1543
        %v1636 = vmul.f32 %v1391, %v1543
        %v1637 = vmul.f32 %v1396, %v1543
        %v1638 = vmul.f32 %v1399, %v1543
        %v1639 = vmul.f32 %v1404, %v1543
        %v1640 = vmul.f32 %v1407, %v1543
        %v1641 = vmul.f32 %v1412, %v1543
        %v1642 = vmul.f32 %v1415, %v1543
        %v1643 = vmul.f32 %v1420, %v1543
        %v1644 = vmul.f32 %v1423, %v1543
        %v1645 = vmul.f32 %v1428, %v1543
        %v1646 = vmul.f32 %v1431, %v1543
        %v1647 = vmul.f32 %v1436, %v1543
        %v1648 = vmul.f32 %v1439, %v1543
        %v1649 = vmul.f32 %v1444, %v1543
        %v1650 = vmul.f32 %v1447, %v1543
        %v1651 = vmul.f32 %v1452, %v1543
        %v1652 = vmul.f32 %v1455, %v1543
        %v1653 = vmul.f32 %v1460, %v1543
        %v1654 = vmul.f32 %v1463, %v1543
        %v1655 = vmul.f32 %v1468, %v1543
        %v1656 = vmul.f32 %v1471, %v1543
        %v1657 = vmul.f32 %v1476, %v1543
        %v1658 = vmul.f32 %v1479, %v1543
        %v1659 = vmul.f32 %v1484, %v1543
        %v1660 = vmul.f32 %v1487, %v1543
        %v1661 = vmul.f32 %v1492, %v1543
        %v1662 = vmul.f32 %v1495, %v1543
        %v1663 = vmul.f32 %v1500, %v1543
        %v1664 = vmul.f32 %v1503, %v1543
        %v1665 = vmul.f32 %v1508, %v1543
        %v1666 = vmul.f32 %v1511, %v1543
        %v1667 = vmul.f32 %v1516, %v1543
        %v1668 = vmul.f32 %v1519, %v1543
        %v1669 = vmul.f32 %v1524, %v1543
        %v1670 = vmul.f32 %v1527, %v1543
        %v1671 = vmul.f32 %v1532, %v1543
        %v1672 = vmul.f32 %v1535, %v1543
        %v1673 = vld [vmem:[%s3] sm:$0x1]
        %v1675 = vlaneseq
        %v1676 = vshrl.u32 %v1675, 7
        %v1677 = vsub.s32 0, %v1676
        %v1678 = vrot.slane %v1673, %v1677
        %v1680 = vadd.f32 %v1545, %v1678
        %v1681 = vadd.f32 %v1546, %v1678
        %v1682 = vadd.f32 %v1547, %v1678
        %v1683 = vadd.f32 %v1548, %v1678
        %v1684 = vadd.f32 %v1549, %v1678
        %v1685 = vadd.f32 %v1550, %v1678
        %v1686 = vadd.f32 %v1551, %v1678
        %v1687 = vadd.f32 %v1552, %v1678
        %v1688 = vadd.f32 %v1553, %v1678
        %v1689 = vadd.f32 %v1554, %v1678
        %v1690 = vadd.f32 %v1555, %v1678
        %v1691 = vadd.f32 %v1556, %v1678
        %v1692 = vadd.f32 %v1557, %v1678
        %v1693 = vadd.f32 %v1558, %v1678
        %v1694 = vadd.f32 %v1559, %v1678
        %v1695 = vadd.f32 %v1560, %v1678
        %v1696 = vadd.f32 %v1561, %v1678
        %v1697 = vadd.f32 %v1562, %v1678
        %v1698 = vadd.f32 %v1563, %v1678
        %v1699 = vadd.f32 %v1564, %v1678
        %v1700 = vadd.f32 %v1565, %v1678
        %v1701 = vadd.f32 %v1566, %v1678
        %v1702 = vadd.f32 %v1567, %v1678
        %v1703 = vadd.f32 %v1568, %v1678
        %v1704 = vadd.f32 %v1569, %v1678
        %v1705 = vadd.f32 %v1570, %v1678
        %v1706 = vadd.f32 %v1571, %v1678
        %v1707 = vadd.f32 %v1572, %v1678
        %v1708 = vadd.f32 %v1573, %v1678
        %v1709 = vadd.f32 %v1574, %v1678
        %v1710 = vadd.f32 %v1575, %v1678
        %v1711 = vadd.f32 %v1576, %v1678
        %v1712 = vadd.f32 %v1577, %v1678
        %v1713 = vadd.f32 %v1578, %v1678
        %v1714 = vadd.f32 %v1579, %v1678
        %v1715 = vadd.f32 %v1580, %v1678
        %v1716 = vadd.f32 %v1581, %v1678
        %v1717 = vadd.f32 %v1582, %v1678
        %v1718 = vadd.f32 %v1583, %v1678
        %v1719 = vadd.f32 %v1584, %v1678
        %v1720 = vadd.f32 %v1585, %v1678
        %v1721 = vadd.f32 %v1586, %v1678
        %v1722 = vadd.f32 %v1587, %v1678
        %v1723 = vadd.f32 %v1588, %v1678
        %v1724 = vadd.f32 %v1589, %v1678
        %v1725 = vadd.f32 %v1590, %v1678
        %v1726 = vadd.f32 %v1591, %v1678
        %v1727 = vadd.f32 %v1592, %v1678
        %v1728 = vadd.f32 %v1593, %v1678
        %v1729 = vadd.f32 %v1594, %v1678
        %v1730 = vadd.f32 %v1595, %v1678
        %v1731 = vadd.f32 %v1596, %v1678
        %v1732 = vadd.f32 %v1597, %v1678
        %v1733 = vadd.f32 %v1598, %v1678
        %v1734 = vadd.f32 %v1599, %v1678
        %v1735 = vadd.f32 %v1600, %v1678
        %v1736 = vadd.f32 %v1601, %v1678
        %v1737 = vadd.f32 %v1602, %v1678
        %v1738 = vadd.f32 %v1603, %v1678
        %v1739 = vadd.f32 %v1604, %v1678
        %v1740 = vadd.f32 %v1605, %v1678
        %v1741 = vadd.f32 %v1606, %v1678
        %v1742 = vadd.f32 %v1607, %v1678
        %v1743 = vadd.f32 %v1608, %v1678
        %v1744 = vadd.f32 %v1609, %v1678
        %v1745 = vadd.f32 %v1610, %v1678
        %v1746 = vadd.f32 %v1611, %v1678
        %v1747 = vadd.f32 %v1612, %v1678
        %v1748 = vadd.f32 %v1613, %v1678
        %v1749 = vadd.f32 %v1614, %v1678
        %v1750 = vadd.f32 %v1615, %v1678
        %v1751 = vadd.f32 %v1616, %v1678
        %v1752 = vadd.f32 %v1617, %v1678
        %v1753 = vadd.f32 %v1618, %v1678
        %v1754 = vadd.f32 %v1619, %v1678
        %v1755 = vadd.f32 %v1620, %v1678
        %v1756 = vadd.f32 %v1621, %v1678
        %v1757 = vadd.f32 %v1622, %v1678
        %v1758 = vadd.f32 %v1623, %v1678
        %v1759 = vadd.f32 %v1624, %v1678
        %v1760 = vadd.f32 %v1625, %v1678
        %v1761 = vadd.f32 %v1626, %v1678
        %v1762 = vadd.f32 %v1627, %v1678
        %v1763 = vadd.f32 %v1628, %v1678
        %v1764 = vadd.f32 %v1629, %v1678
        %v1765 = vadd.f32 %v1630, %v1678
        %v1766 = vadd.f32 %v1631, %v1678
        %v1767 = vadd.f32 %v1632, %v1678
        %v1768 = vadd.f32 %v1633, %v1678
        %v1769 = vadd.f32 %v1634, %v1678
        %v1770 = vadd.f32 %v1635, %v1678
        %v1771 = vadd.f32 %v1636, %v1678
        %v1772 = vadd.f32 %v1637, %v1678
        %v1773 = vadd.f32 %v1638, %v1678
        %v1774 = vadd.f32 %v1639, %v1678
        %v1775 = vadd.f32 %v1640, %v1678
        %v1776 = vadd.f32 %v1641, %v1678
        %v1777 = vadd.f32 %v1642, %v1678
        %v1778 = vadd.f32 %v1643, %v1678
        %v1779 = vadd.f32 %v1644, %v1678
        %v1780 = vadd.f32 %v1645, %v1678
        %v1781 = vadd.f32 %v1646, %v1678
        %v1782 = vadd.f32 %v1647, %v1678
        %v1783 = vadd.f32 %v1648, %v1678
        %v1784 = vadd.f32 %v1649, %v1678
        %v1785 = vadd.f32 %v1650, %v1678
        %v1786 = vadd.f32 %v1651, %v1678
        %v1787 = vadd.f32 %v1652, %v1678
        %v1788 = vadd.f32 %v1653, %v1678
        %v1789 = vadd.f32 %v1654, %v1678
        %v1790 = vadd.f32 %v1655, %v1678
        %v1791 = vadd.f32 %v1656, %v1678
        %v1792 = vadd.f32 %v1657, %v1678
        %v1793 = vadd.f32 %v1658, %v1678
        %v1794 = vadd.f32 %v1659, %v1678
        %v1795 = vadd.f32 %v1660, %v1678
        %v1796 = vadd.f32 %v1661, %v1678
        %v1797 = vadd.f32 %v1662, %v1678
        %v1798 = vadd.f32 %v1663, %v1678
        %v1799 = vadd.f32 %v1664, %v1678
        %v1800 = vadd.f32 %v1665, %v1678
        %v1801 = vadd.f32 %v1666, %v1678
        %v1802 = vadd.f32 %v1667, %v1678
        %v1803 = vadd.f32 %v1668, %v1678
        %v1804 = vadd.f32 %v1669, %v1678
        %v1805 = vadd.f32 %v1670, %v1678
        %v1806 = vadd.f32 %v1671, %v1678
        %v1807 = vadd.f32 %v1672, %v1678
        %v1808 = vmax.f32 %v1680, 0.0
        %v1809 = vmax.f32 %v1681, 0.0
        %v1810 = vmax.f32 %v1682, 0.0
        %v1811 = vmax.f32 %v1683, 0.0
        %v1812 = vmax.f32 %v1684, 0.0
        %v1813 = vmax.f32 %v1685, 0.0
        %v1814 = vmax.f32 %v1686, 0.0
        %v1815 = vmax.f32 %v1687, 0.0
        %v1816 = vmax.f32 %v1688, 0.0
        %v1817 = vmax.f32 %v1689, 0.0
        %v1818 = vmax.f32 %v1690, 0.0
        %v1819 = vmax.f32 %v1691, 0.0
        %v1820 = vmax.f32 %v1692, 0.0
        %v1821 = vmax.f32 %v1693, 0.0
        %v1822 = vmax.f32 %v1694, 0.0
        %v1823 = vmax.f32 %v1695, 0.0
        %v1824 = vmax.f32 %v1696, 0.0
        %v1825 = vmax.f32 %v1697, 0.0
        %v1826 = vmax.f32 %v1698, 0.0
        %v1827 = vmax.f32 %v1699, 0.0
        %v1828 = vmax.f32 %v1700, 0.0
        %v1829 = vmax.f32 %v1701, 0.0
        %v1830 = vmax.f32 %v1702, 0.0
        %v1831 = vmax.f32 %v1703, 0.0
        %v1832 = vmax.f32 %v1704, 0.0
        %v1833 = vmax.f32 %v1705, 0.0
        %v1834 = vmax.f32 %v1706, 0.0
        %v1835 = vmax.f32 %v1707, 0.0
        %v1836 = vmax.f32 %v1708, 0.0
        %v1837 = vmax.f32 %v1709, 0.0
        %v1838 = vmax.f32 %v1710, 0.0
        %v1839 = vmax.f32 %v1711, 0.0
        %v1840 = vmax.f32 %v1712, 0.0
        %v1841 = vmax.f32 %v1713, 0.0
        %v1842 = vmax.f32 %v1714, 0.0
        %v1843 = vmax.f32 %v1715, 0.0
        %v1844 = vmax.f32 %v1716, 0.0
        %v1845 = vmax.f32 %v1717, 0.0
        %v1846 = vmax.f32 %v1718, 0.0
        %v1847 = vmax.f32 %v1719, 0.0
        %v1848 = vmax.f32 %v1720, 0.0
        %v1849 = vmax.f32 %v1721, 0.0
        %v1850 = vmax.f32 %v1722, 0.0
        %v1851 = vmax.f32 %v1723, 0.0
        %v1852 = vmax.f32 %v1724, 0.0
        %v1853 = vmax.f32 %v1725, 0.0
        %v1854 = vmax.f32 %v1726, 0.0
        %v1855 = vmax.f32 %v1727, 0.0
        %v1856 = vmax.f32 %v1728, 0.0
        %v1857 = vmax.f32 %v1729, 0.0
        %v1858 = vmax.f32 %v1730, 0.0
        %v1859 = vmax.f32 %v1731, 0.0
        %v1860 = vmax.f32 %v1732, 0.0
        %v1861 = vmax.f32 %v1733, 0.0
        %v1862 = vmax.f32 %v1734, 0.0
        %v1863 = vmax.f32 %v1735, 0.0
        %v1864 = vmax.f32 %v1736, 0.0
        %v1865 = vmax.f32 %v1737, 0.0
        %v1866 = vmax.f32 %v1738, 0.0
        %v1867 = vmax.f32 %v1739, 0.0
        %v1868 = vmax.f32 %v1740, 0.0
        %v1869 = vmax.f32 %v1741, 0.0
        %v1870 = vmax.f32 %v1742, 0.0
        %v1871 = vmax.f32 %v1743, 0.0
        %v1872 = vmax.f32 %v1744, 0.0
        %v1873 = vmax.f32 %v1745, 0.0
        %v1874 = vmax.f32 %v1746, 0.0
        %v1875 = vmax.f32 %v1747, 0.0
        %v1876 = vmax.f32 %v1748, 0.0
        %v1877 = vmax.f32 %v1749, 0.0
        %v1878 = vmax.f32 %v1750, 0.0
        %v1879 = vmax.f32 %v1751, 0.0
        %v1880 = vmax.f32 %v1752, 0.0
        %v1881 = vmax.f32 %v1753, 0.0
        %v1882 = vmax.f32 %v1754, 0.0
        %v1883 = vmax.f32 %v1755, 0.0
        %v1884 = vmax.f32 %v1756, 0.0
        %v1885 = vmax.f32 %v1757, 0.0
        %v1886 = vmax.f32 %v1758, 0.0
        %v1887 = vmax.f32 %v1759, 0.0
        %v1888 = vmax.f32 %v1760, 0.0
        %v1889 = vmax.f32 %v1761, 0.0
        %v1890 = vmax.f32 %v1762, 0.0
        %v1891 = vmax.f32 %v1763, 0.0
        %v1892 = vmax.f32 %v1764, 0.0
        %v1893 = vmax.f32 %v1765, 0.0
        %v1894 = vmax.f32 %v1766, 0.0
        %v1895 = vmax.f32 %v1767, 0.0
        %v1896 = vmax.f32 %v1768, 0.0
        %v1897 = vmax.f32 %v1769, 0.0
        %v1898 = vmax.f32 %v1770, 0.0
        %v1899 = vmax.f32 %v1771, 0.0
        %v1900 = vmax.f32 %v1772, 0.0
        %v1901 = vmax.f32 %v1773, 0.0
        %v1902 = vmax.f32 %v1774, 0.0
        %v1903 = vmax.f32 %v1775, 0.0
        %v1904 = vmax.f32 %v1776, 0.0
        %v1905 = vmax.f32 %v1777, 0.0
        %v1906 = vmax.f32 %v1778, 0.0
        %v1907 = vmax.f32 %v1779, 0.0
        %v1908 = vmax.f32 %v1780, 0.0
        %v1909 = vmax.f32 %v1781, 0.0
        %v1910 = vmax.f32 %v1782, 0.0
        %v1911 = vmax.f32 %v1783, 0.0
        %v1912 = vmax.f32 %v1784, 0.0
        %v1913 = vmax.f32 %v1785, 0.0
        %v1914 = vmax.f32 %v1786, 0.0
        %v1915 = vmax.f32 %v1787, 0.0
        %v1916 = vmax.f32 %v1788, 0.0
        %v1917 = vmax.f32 %v1789, 0.0
        %v1918 = vmax.f32 %v1790, 0.0
        %v1919 = vmax.f32 %v1791, 0.0
        %v1920 = vmax.f32 %v1792, 0.0
        %v1921 = vmax.f32 %v1793, 0.0
        %v1922 = vmax.f32 %v1794, 0.0
        %v1923 = vmax.f32 %v1795, 0.0
        %v1924 = vmax.f32 %v1796, 0.0
        %v1925 = vmax.f32 %v1797, 0.0
        %v1926 = vmax.f32 %v1798, 0.0
        %v1927 = vmax.f32 %v1799, 0.0
        %v1928 = vmax.f32 %v1800, 0.0
        %v1929 = vmax.f32 %v1801, 0.0
        %v1930 = vmax.f32 %v1802, 0.0
        %v1931 = vmax.f32 %v1803, 0.0
        %v1932 = vmax.f32 %v1804, 0.0
        %v1933 = vmax.f32 %v1805, 0.0
        %v1934 = vmax.f32 %v1806, 0.0
        %v1935 = vmax.f32 %v1807, 0.0
        %v1936 = vld [vmem:[%s281] sm:$0xff]
        %v1937 = vld [vmem:[%s281 + $0x8] sm:$0xff]
        %v1938 = vld [vmem:[%s281 + $0x10] sm:$0xff]
        %v1939 = vld [vmem:[%s281 + $0x18] sm:$0xff]
        %v1940 = vld [vmem:[%s281 + $0x20] sm:$0xff]
        %v1941 = vld [vmem:[%s281 + $0x28] sm:$0xff]
        %v1942 = vld [vmem:[%s281 + $0x30] sm:$0xff]
        %v1943 = vld [vmem:[%s281 + $0x38] sm:$0xff]
        %v1944 = vld [vmem:[%s281 + $0x40] sm:$0xff]
        %v1945 = vld [vmem:[%s281 + $0x48] sm:$0xff]
        %v1946 = vld [vmem:[%s281 + $0x50] sm:$0xff]
        %v1947 = vld [vmem:[%s281 + $0x58] sm:$0xff]
        %v1948 = vld [vmem:[%s281 + $0x60] sm:$0xff]
        %v1949 = vld [vmem:[%s281 + $0x68] sm:$0xff]
        %v1950 = vld [vmem:[%s281 + $0x70] sm:$0xff]
        %v1951 = vld [vmem:[%s281 + $0x78] sm:$0xff]
        %v1952 = vld [vmem:[%s281 + $0x80] sm:$0xff]
        %v1953 = vld [vmem:[%s281 + $0x88] sm:$0xff]
        %v1954 = vld [vmem:[%s281 + $0x90] sm:$0xff]
        %v1955 = vld [vmem:[%s281 + $0x98] sm:$0xff]
        %v1956 = vld [vmem:[%s281 + $0xa0] sm:$0xff]
        %v1957 = vld [vmem:[%s281 + $0xa8] sm:$0xff]
        %v1958 = vld [vmem:[%s281 + $0xb0] sm:$0xff]
        %v1959 = vld [vmem:[%s281 + $0xb8] sm:$0xff]
        %v1960 = vld [vmem:[%s281 + $0xc0] sm:$0xff]
        %v1961 = vld [vmem:[%s281 + $0xc8] sm:$0xff]
        %v1962 = vld [vmem:[%s281 + $0xd0] sm:$0xff]
        %v1963 = vld [vmem:[%s281 + $0xd8] sm:$0xff]
        %v1964 = vld [vmem:[%s281 + $0xe0] sm:$0xff]
        %v1965 = vld [vmem:[%s281 + $0xe8] sm:$0xff]
        %v1966 = vld [vmem:[%s281 + $0xf0] sm:$0xff]
        %v1967 = vld [vmem:[%s281 + $0xf8] sm:$0xff]
        %v1968 = vld [vmem:[%s281 + $0x100] sm:$0xff]
        %v1969 = vld [vmem:[%s281 + $0x108] sm:$0xff]
        %v1970 = vld [vmem:[%s281 + $0x110] sm:$0xff]
        %v1971 = vld [vmem:[%s281 + $0x118] sm:$0xff]
        %v1972 = vld [vmem:[%s281 + $0x120] sm:$0xff]
        %v1973 = vld [vmem:[%s281 + $0x128] sm:$0xff]
        %v1974 = vld [vmem:[%s281 + $0x130] sm:$0xff]
        %v1975 = vld [vmem:[%s281 + $0x138] sm:$0xff]
        %v1976 = vld [vmem:[%s281 + $0x140] sm:$0xff]
        %v1977 = vld [vmem:[%s281 + $0x148] sm:$0xff]
        %v1978 = vld [vmem:[%s281 + $0x150] sm:$0xff]
        %v1979 = vld [vmem:[%s281 + $0x158] sm:$0xff]
        %v1980 = vld [vmem:[%s281 + $0x160] sm:$0xff]
        %v1981 = vld [vmem:[%s281 + $0x168] sm:$0xff]
        %v1982 = vld [vmem:[%s281 + $0x170] sm:$0xff]
        %v1983 = vld [vmem:[%s281 + $0x178] sm:$0xff]
        %v1984 = vld [vmem:[%s281 + $0x180] sm:$0xff]
        %v1985 = vld [vmem:[%s281 + $0x188] sm:$0xff]
        %v1986 = vld [vmem:[%s281 + $0x190] sm:$0xff]
        %v1987 = vld [vmem:[%s281 + $0x198] sm:$0xff]
        %v1988 = vld [vmem:[%s281 + $0x1a0] sm:$0xff]
        %v1989 = vld [vmem:[%s281 + $0x1a8] sm:$0xff]
        %v1990 = vld [vmem:[%s281 + $0x1b0] sm:$0xff]
        %v1991 = vld [vmem:[%s281 + $0x1b8] sm:$0xff]
        %v1992 = vld [vmem:[%s281 + $0x1c0] sm:$0xff]
        %v1993 = vld [vmem:[%s281 + $0x1c8] sm:$0xff]
        %v1994 = vld [vmem:[%s281 + $0x1d0] sm:$0xff]
        %v1995 = vld [vmem:[%s281 + $0x1d8] sm:$0xff]
        %v1996 = vld [vmem:[%s281 + $0x1e0] sm:$0xff]
        %v1997 = vld [vmem:[%s281 + $0x1e8] sm:$0xff]
        %v1998 = vld [vmem:[%s281 + $0x1f0] sm:$0xff]
        %v1999 = vld [vmem:[%s281 + $0x1f8] sm:$0xff]
        %v2000 = vld [vmem:[%s281 + $0x200] sm:$0xff]
        %v2001 = vld [vmem:[%s281 + $0x208] sm:$0xff]
        %v2002 = vld [vmem:[%s281 + $0x210] sm:$0xff]
        %v2003 = vld [vmem:[%s281 + $0x218] sm:$0xff]
        %v2004 = vld [vmem:[%s281 + $0x220] sm:$0xff]
        %v2005 = vld [vmem:[%s281 + $0x228] sm:$0xff]
        %v2006 = vld [vmem:[%s281 + $0x230] sm:$0xff]
        %v2007 = vld [vmem:[%s281 + $0x238] sm:$0xff]
        %v2008 = vld [vmem:[%s281 + $0x240] sm:$0xff]
        %v2009 = vld [vmem:[%s281 + $0x248] sm:$0xff]
        %v2010 = vld [vmem:[%s281 + $0x250] sm:$0xff]
        %v2011 = vld [vmem:[%s281 + $0x258] sm:$0xff]
        %v2012 = vld [vmem:[%s281 + $0x260] sm:$0xff]
        %v2013 = vld [vmem:[%s281 + $0x268] sm:$0xff]
        %v2014 = vld [vmem:[%s281 + $0x270] sm:$0xff]
        %v2015 = vld [vmem:[%s281 + $0x278] sm:$0xff]
        %v2016 = vld [vmem:[%s281 + $0x280] sm:$0xff]
        %v2017 = vld [vmem:[%s281 + $0x288] sm:$0xff]
        %v2018 = vld [vmem:[%s281 + $0x290] sm:$0xff]
        %v2019 = vld [vmem:[%s281 + $0x298] sm:$0xff]
        %v2020 = vld [vmem:[%s281 + $0x2a0] sm:$0xff]
        %v2021 = vld [vmem:[%s281 + $0x2a8] sm:$0xff]
        %v2022 = vld [vmem:[%s281 + $0x2b0] sm:$0xff]
        %v2023 = vld [vmem:[%s281 + $0x2b8] sm:$0xff]
        %v2024 = vld [vmem:[%s281 + $0x2c0] sm:$0xff]
        %v2025 = vld [vmem:[%s281 + $0x2c8] sm:$0xff]
        %v2026 = vld [vmem:[%s281 + $0x2d0] sm:$0xff]
        %v2027 = vld [vmem:[%s281 + $0x2d8] sm:$0xff]
        %v2028 = vld [vmem:[%s281 + $0x2e0] sm:$0xff]
        %v2029 = vld [vmem:[%s281 + $0x2e8] sm:$0xff]
        %v2030 = vld [vmem:[%s281 + $0x2f0] sm:$0xff]
        %v2031 = vld [vmem:[%s281 + $0x2f8] sm:$0xff]
        %v2032 = vld [vmem:[%s281 + $0x300] sm:$0xff]
        %v2033 = vld [vmem:[%s281 + $0x308] sm:$0xff]
        %v2034 = vld [vmem:[%s281 + $0x310] sm:$0xff]
        %v2035 = vld [vmem:[%s281 + $0x318] sm:$0xff]
        %v2036 = vld [vmem:[%s281 + $0x320] sm:$0xff]
        %v2037 = vld [vmem:[%s281 + $0x328] sm:$0xff]
        %v2038 = vld [vmem:[%s281 + $0x330] sm:$0xff]
        %v2039 = vld [vmem:[%s281 + $0x338] sm:$0xff]
        %v2040 = vld [vmem:[%s281 + $0x340] sm:$0xff]
        %v2041 = vld [vmem:[%s281 + $0x348] sm:$0xff]
        %v2042 = vld [vmem:[%s281 + $0x350] sm:$0xff]
        %v2043 = vld [vmem:[%s281 + $0x358] sm:$0xff]
        %v2044 = vld [vmem:[%s281 + $0x360] sm:$0xff]
        %v2045 = vld [vmem:[%s281 + $0x368] sm:$0xff]
        %v2046 = vld [vmem:[%s281 + $0x370] sm:$0xff]
        %v2047 = vld [vmem:[%s281 + $0x378] sm:$0xff]
        %v2048 = vld [vmem:[%s281 + $0x380] sm:$0xff]
        %v2049 = vld [vmem:[%s281 + $0x388] sm:$0xff]
        %v2050 = vld [vmem:[%s281 + $0x390] sm:$0xff]
        %v2051 = vld [vmem:[%s281 + $0x398] sm:$0xff]
        %v2052 = vld [vmem:[%s281 + $0x3a0] sm:$0xff]
        %v2053 = vld [vmem:[%s281 + $0x3a8] sm:$0xff]
        %v2054 = vld [vmem:[%s281 + $0x3b0] sm:$0xff]
        %v2055 = vld [vmem:[%s281 + $0x3b8] sm:$0xff]
        %v2056 = vld [vmem:[%s281 + $0x3c0] sm:$0xff]
        %v2057 = vld [vmem:[%s281 + $0x3c8] sm:$0xff]
        %v2058 = vld [vmem:[%s281 + $0x3d0] sm:$0xff]
        %v2059 = vld [vmem:[%s281 + $0x3d8] sm:$0xff]
        %v2060 = vld [vmem:[%s281 + $0x3e0] sm:$0xff]
        %v2061 = vld [vmem:[%s281 + $0x3e8] sm:$0xff]
        %v2062 = vld [vmem:[%s281 + $0x3f0] sm:$0xff]
        %v2063 = vld [vmem:[%s281 + $0x3f8] sm:$0xff]
        %2065 = vset.pattern.permute.xlu0 0
        %2066 = vperm.xlu0 %2065, %v1936
        %v2067 = vpop.permute.xlu0 %2066
        %2070 = vset.pattern.permute.xlu0 0
        %2071 = vperm.xlu0 %2070, %v1937
        %v2072 = vpop.permute.xlu0 %2071
        %2075 = vset.pattern.permute.xlu0 0
        %2076 = vperm.xlu0 %2075, %v1938
        %v2077 = vpop.permute.xlu0 %2076
        %2080 = vset.pattern.permute.xlu0 0
        %2081 = vperm.xlu0 %2080, %v1939
        %v2082 = vpop.permute.xlu0 %2081
        %2085 = vset.pattern.permute.xlu0 0
        %2086 = vperm.xlu0 %2085, %v1940
        %v2087 = vpop.permute.xlu0 %2086
        %2090 = vset.pattern.permute.xlu0 0
        %2091 = vperm.xlu0 %2090, %v1941
        %v2092 = vpop.permute.xlu0 %2091
        %2095 = vset.pattern.permute.xlu0 0
        %2096 = vperm.xlu0 %2095, %v1942
        %v2097 = vpop.permute.xlu0 %2096
        %2100 = vset.pattern.permute.xlu0 0
        %2101 = vperm.xlu0 %2100, %v1943
        %v2102 = vpop.permute.xlu0 %2101
        %2105 = vset.pattern.permute.xlu0 0
        %2106 = vperm.xlu0 %2105, %v1944
        %v2107 = vpop.permute.xlu0 %2106
        %2110 = vset.pattern.permute.xlu0 0
        %2111 = vperm.xlu0 %2110, %v1945
        %v2112 = vpop.permute.xlu0 %2111
        %2115 = vset.pattern.permute.xlu0 0
        %2116 = vperm.xlu0 %2115, %v1946
        %v2117 = vpop.permute.xlu0 %2116
        %2120 = vset.pattern.permute.xlu0 0
        %2121 = vperm.xlu0 %2120, %v1947
        %v2122 = vpop.permute.xlu0 %2121
        %2125 = vset.pattern.permute.xlu0 0
        %2126 = vperm.xlu0 %2125, %v1948
        %v2127 = vpop.permute.xlu0 %2126
        %2130 = vset.pattern.permute.xlu0 0
        %2131 = vperm.xlu0 %2130, %v1949
        %v2132 = vpop.permute.xlu0 %2131
        %2135 = vset.pattern.permute.xlu0 0
        %2136 = vperm.xlu0 %2135, %v1950
        %v2137 = vpop.permute.xlu0 %2136
        %2140 = vset.pattern.permute.xlu0 0
        %2141 = vperm.xlu0 %2140, %v1951
        %v2142 = vpop.permute.xlu0 %2141
        %2145 = vset.pattern.permute.xlu0 0
        %2146 = vperm.xlu0 %2145, %v1952
        %v2147 = vpop.permute.xlu0 %2146
        %2150 = vset.pattern.permute.xlu0 0
        %2151 = vperm.xlu0 %2150, %v1953
        %v2152 = vpop.permute.xlu0 %2151
        %2155 = vset.pattern.permute.xlu0 0
        %2156 = vperm.xlu0 %2155, %v1954
        %v2157 = vpop.permute.xlu0 %2156
        %2160 = vset.pattern.permute.xlu0 0
        %2161 = vperm.xlu0 %2160, %v1955
        %v2162 = vpop.permute.xlu0 %2161
        %2165 = vset.pattern.permute.xlu0 0
        %2166 = vperm.xlu0 %2165, %v1956
        %v2167 = vpop.permute.xlu0 %2166
        %2170 = vset.pattern.permute.xlu0 0
        %2171 = vperm.xlu0 %2170, %v1957
        %v2172 = vpop.permute.xlu0 %2171
        %2175 = vset.pattern.permute.xlu0 0
        %2176 = vperm.xlu0 %2175, %v1958
        %v2177 = vpop.permute.xlu0 %2176
        %2180 = vset.pattern.permute.xlu0 0
        %2181 = vperm.xlu0 %2180, %v1959
        %v2182 = vpop.permute.xlu0 %2181
        %2185 = vset.pattern.permute.xlu0 0
        %2186 = vperm.xlu0 %2185, %v1960
        %v2187 = vpop.permute.xlu0 %2186
        %2190 = vset.pattern.permute.xlu0 0
        %2191 = vperm.xlu0 %2190, %v1961
        %v2192 = vpop.permute.xlu0 %2191
        %2195 = vset.pattern.permute.xlu0 0
        %2196 = vperm.xlu0 %2195, %v1962
        %v2197 = vpop.permute.xlu0 %2196
        %2200 = vset.pattern.permute.xlu0 0
        %2201 = vperm.xlu0 %2200, %v1963
        %v2202 = vpop.permute.xlu0 %2201
        %2205 = vset.pattern.permute.xlu0 0
        %2206 = vperm.xlu0 %2205, %v1964
        %v2207 = vpop.permute.xlu0 %2206
        %2210 = vset.pattern.permute.xlu0 0
        %2211 = vperm.xlu0 %2210, %v1965
        %v2212 = vpop.permute.xlu0 %2211
        %2215 = vset.pattern.permute.xlu0 0
        %2216 = vperm.xlu0 %2215, %v1966
        %v2217 = vpop.permute.xlu0 %2216
        %2220 = vset.pattern.permute.xlu0 0
        %2221 = vperm.xlu0 %2220, %v1967
        %v2222 = vpop.permute.xlu0 %2221
        %2225 = vset.pattern.permute.xlu0 0
        %2226 = vperm.xlu0 %2225, %v1968
        %v2227 = vpop.permute.xlu0 %2226
        %2230 = vset.pattern.permute.xlu0 0
        %2231 = vperm.xlu0 %2230, %v1969
        %v2232 = vpop.permute.xlu0 %2231
        %2235 = vset.pattern.permute.xlu0 0
        %2236 = vperm.xlu0 %2235, %v1970
        %v2237 = vpop.permute.xlu0 %2236
        %2240 = vset.pattern.permute.xlu0 0
        %2241 = vperm.xlu0 %2240, %v1971
        %v2242 = vpop.permute.xlu0 %2241
        %2245 = vset.pattern.permute.xlu0 0
        %2246 = vperm.xlu0 %2245, %v1972
        %v2247 = vpop.permute.xlu0 %2246
        %2250 = vset.pattern.permute.xlu0 0
        %2251 = vperm.xlu0 %2250, %v1973
        %v2252 = vpop.permute.xlu0 %2251
        %2255 = vset.pattern.permute.xlu0 0
        %2256 = vperm.xlu0 %2255, %v1974
        %v2257 = vpop.permute.xlu0 %2256
        %2260 = vset.pattern.permute.xlu0 0
        %2261 = vperm.xlu0 %2260, %v1975
        %v2262 = vpop.permute.xlu0 %2261
        %2265 = vset.pattern.permute.xlu0 0
        %2266 = vperm.xlu0 %2265, %v1976
        %v2267 = vpop.permute.xlu0 %2266
        %2270 = vset.pattern.permute.xlu0 0
        %2271 = vperm.xlu0 %2270, %v1977
        %v2272 = vpop.permute.xlu0 %2271
        %2275 = vset.pattern.permute.xlu0 0
        %2276 = vperm.xlu0 %2275, %v1978
        %v2277 = vpop.permute.xlu0 %2276
        %2280 = vset.pattern.permute.xlu0 0
        %2281 = vperm.xlu0 %2280, %v1979
        %v2282 = vpop.permute.xlu0 %2281
        %2285 = vset.pattern.permute.xlu0 0
        %2286 = vperm.xlu0 %2285, %v1980
        %v2287 = vpop.permute.xlu0 %2286
        %2290 = vset.pattern.permute.xlu0 0
        %2291 = vperm.xlu0 %2290, %v1981
        %v2292 = vpop.permute.xlu0 %2291
        %2295 = vset.pattern.permute.xlu0 0
        %2296 = vperm.xlu0 %2295, %v1982
        %v2297 = vpop.permute.xlu0 %2296
        %2300 = vset.pattern.permute.xlu0 0
        %2301 = vperm.xlu0 %2300, %v1983
        %v2302 = vpop.permute.xlu0 %2301
        %2305 = vset.pattern.permute.xlu0 0
        %2306 = vperm.xlu0 %2305, %v1984
        %v2307 = vpop.permute.xlu0 %2306
        %2310 = vset.pattern.permute.xlu0 0
        %2311 = vperm.xlu0 %2310, %v1985
        %v2312 = vpop.permute.xlu0 %2311
        %2315 = vset.pattern.permute.xlu0 0
        %2316 = vperm.xlu0 %2315, %v1986
        %v2317 = vpop.permute.xlu0 %2316
        %2320 = vset.pattern.permute.xlu0 0
        %2321 = vperm.xlu0 %2320, %v1987
        %v2322 = vpop.permute.xlu0 %2321
        %2325 = vset.pattern.permute.xlu0 0
        %2326 = vperm.xlu0 %2325, %v1988
        %v2327 = vpop.permute.xlu0 %2326
        %2330 = vset.pattern.permute.xlu0 0
        %2331 = vperm.xlu0 %2330, %v1989
        %v2332 = vpop.permute.xlu0 %2331
        %2335 = vset.pattern.permute.xlu0 0
        %2336 = vperm.xlu0 %2335, %v1990
        %v2337 = vpop.permute.xlu0 %2336
        %2340 = vset.pattern.permute.xlu0 0
        %2341 = vperm.xlu0 %2340, %v1991
        %v2342 = vpop.permute.xlu0 %2341
        %2345 = vset.pattern.permute.xlu0 0
        %2346 = vperm.xlu0 %2345, %v1992
        %v2347 = vpop.permute.xlu0 %2346
        %2350 = vset.pattern.permute.xlu0 0
        %2351 = vperm.xlu0 %2350, %v1993
        %v2352 = vpop.permute.xlu0 %2351
        %2355 = vset.pattern.permute.xlu0 0
        %2356 = vperm.xlu0 %2355, %v1994
        %v2357 = vpop.permute.xlu0 %2356
        %2360 = vset.pattern.permute.xlu0 0
        %2361 = vperm.xlu0 %2360, %v1995
        %v2362 = vpop.permute.xlu0 %2361
        %2365 = vset.pattern.permute.xlu0 0
        %2366 = vperm.xlu0 %2365, %v1996
        %v2367 = vpop.permute.xlu0 %2366
        %2370 = vset.pattern.permute.xlu0 0
        %2371 = vperm.xlu0 %2370, %v1997
        %v2372 = vpop.permute.xlu0 %2371
        %2375 = vset.pattern.permute.xlu0 0
        %2376 = vperm.xlu0 %2375, %v1998
        %v2377 = vpop.permute.xlu0 %2376
        %2380 = vset.pattern.permute.xlu0 0
        %2381 = vperm.xlu0 %2380, %v1999
        %v2382 = vpop.permute.xlu0 %2381
        %2385 = vset.pattern.permute.xlu0 0
        %2386 = vperm.xlu0 %2385, %v2000
        %v2387 = vpop.permute.xlu0 %2386
        %2390 = vset.pattern.permute.xlu0 0
        %2391 = vperm.xlu0 %2390, %v2001
        %v2392 = vpop.permute.xlu0 %2391
        %2395 = vset.pattern.permute.xlu0 0
        %2396 = vperm.xlu0 %2395, %v2002
        %v2397 = vpop.permute.xlu0 %2396
        %2400 = vset.pattern.permute.xlu0 0
        %2401 = vperm.xlu0 %2400, %v2003
        %v2402 = vpop.permute.xlu0 %2401
        %2405 = vset.pattern.permute.xlu0 0
        %2406 = vperm.xlu0 %2405, %v2004
        %v2407 = vpop.permute.xlu0 %2406
        %2410 = vset.pattern.permute.xlu0 0
        %2411 = vperm.xlu0 %2410, %v2005
        %v2412 = vpop.permute.xlu0 %2411
        %2415 = vset.pattern.permute.xlu0 0
        %2416 = vperm.xlu0 %2415, %v2006
        %v2417 = vpop.permute.xlu0 %2416
        %2420 = vset.pattern.permute.xlu0 0
        %2421 = vperm.xlu0 %2420, %v2007
        %v2422 = vpop.permute.xlu0 %2421
        %2425 = vset.pattern.permute.xlu0 0
        %2426 = vperm.xlu0 %2425, %v2008
        %v2427 = vpop.permute.xlu0 %2426
        %2430 = vset.pattern.permute.xlu0 0
        %2431 = vperm.xlu0 %2430, %v2009
        %v2432 = vpop.permute.xlu0 %2431
        %2435 = vset.pattern.permute.xlu0 0
        %2436 = vperm.xlu0 %2435, %v2010
        %v2437 = vpop.permute.xlu0 %2436
        %2440 = vset.pattern.permute.xlu0 0
        %2441 = vperm.xlu0 %2440, %v2011
        %v2442 = vpop.permute.xlu0 %2441
        %2445 = vset.pattern.permute.xlu0 0
        %2446 = vperm.xlu0 %2445, %v2012
        %v2447 = vpop.permute.xlu0 %2446
        %2450 = vset.pattern.permute.xlu0 0
        %2451 = vperm.xlu0 %2450, %v2013
        %v2452 = vpop.permute.xlu0 %2451
        %2455 = vset.pattern.permute.xlu0 0
        %2456 = vperm.xlu0 %2455, %v2014
        %v2457 = vpop.permute.xlu0 %2456
        %2460 = vset.pattern.permute.xlu0 0
        %2461 = vperm.xlu0 %2460, %v2015
        %v2462 = vpop.permute.xlu0 %2461
        %2465 = vset.pattern.permute.xlu0 0
        %2466 = vperm.xlu0 %2465, %v2016
        %v2467 = vpop.permute.xlu0 %2466
        %2470 = vset.pattern.permute.xlu0 0
        %2471 = vperm.xlu0 %2470, %v2017
        %v2472 = vpop.permute.xlu0 %2471
        %2475 = vset.pattern.permute.xlu0 0
        %2476 = vperm.xlu0 %2475, %v2018
        %v2477 = vpop.permute.xlu0 %2476
        %2480 = vset.pattern.permute.xlu0 0
        %2481 = vperm.xlu0 %2480, %v2019
        %v2482 = vpop.permute.xlu0 %2481
        %2485 = vset.pattern.permute.xlu0 0
        %2486 = vperm.xlu0 %2485, %v2020
        %v2487 = vpop.permute.xlu0 %2486
        %2490 = vset.pattern.permute.xlu0 0
        %2491 = vperm.xlu0 %2490, %v2021
        %v2492 = vpop.permute.xlu0 %2491
        %2495 = vset.pattern.permute.xlu0 0
        %2496 = vperm.xlu0 %2495, %v2022
        %v2497 = vpop.permute.xlu0 %2496
        %2500 = vset.pattern.permute.xlu0 0
        %2501 = vperm.xlu0 %2500, %v2023
        %v2502 = vpop.permute.xlu0 %2501
        %2505 = vset.pattern.permute.xlu0 0
        %2506 = vperm.xlu0 %2505, %v2024
        %v2507 = vpop.permute.xlu0 %2506
        %2510 = vset.pattern.permute.xlu0 0
        %2511 = vperm.xlu0 %2510, %v2025
        %v2512 = vpop.permute.xlu0 %2511
        %2515 = vset.pattern.permute.xlu0 0
        %2516 = vperm.xlu0 %2515, %v2026
        %v2517 = vpop.permute.xlu0 %2516
        %2520 = vset.pattern.permute.xlu0 0
        %2521 = vperm.xlu0 %2520, %v2027
        %v2522 = vpop.permute.xlu0 %2521
        %2525 = vset.pattern.permute.xlu0 0
        %2526 = vperm.xlu0 %2525, %v2028
        %v2527 = vpop.permute.xlu0 %2526
        %2530 = vset.pattern.permute.xlu0 0
        %2531 = vperm.xlu0 %2530, %v2029
        %v2532 = vpop.permute.xlu0 %2531
        %2535 = vset.pattern.permute.xlu0 0
        %2536 = vperm.xlu0 %2535, %v2030
        %v2537 = vpop.permute.xlu0 %2536
        %2540 = vset.pattern.permute.xlu0 0
        %2541 = vperm.xlu0 %2540, %v2031
        %v2542 = vpop.permute.xlu0 %2541
        %2545 = vset.pattern.permute.xlu0 0
        %2546 = vperm.xlu0 %2545, %v2032
        %v2547 = vpop.permute.xlu0 %2546
        %2550 = vset.pattern.permute.xlu0 0
        %2551 = vperm.xlu0 %2550, %v2033
        %v2552 = vpop.permute.xlu0 %2551
        %2555 = vset.pattern.permute.xlu0 0
        %2556 = vperm.xlu0 %2555, %v2034
        %v2557 = vpop.permute.xlu0 %2556
        %2560 = vset.pattern.permute.xlu0 0
        %2561 = vperm.xlu0 %2560, %v2035
        %v2562 = vpop.permute.xlu0 %2561
        %2565 = vset.pattern.permute.xlu0 0
        %2566 = vperm.xlu0 %2565, %v2036
        %v2567 = vpop.permute.xlu0 %2566
        %2570 = vset.pattern.permute.xlu0 0
        %2571 = vperm.xlu0 %2570, %v2037
        %v2572 = vpop.permute.xlu0 %2571
        %2575 = vset.pattern.permute.xlu0 0
        %2576 = vperm.xlu0 %2575, %v2038
        %v2577 = vpop.permute.xlu0 %2576
        %2580 = vset.pattern.permute.xlu0 0
        %2581 = vperm.xlu0 %2580, %v2039
        %v2582 = vpop.permute.xlu0 %2581
        %2585 = vset.pattern.permute.xlu0 0
        %2586 = vperm.xlu0 %2585, %v2040
        %v2587 = vpop.permute.xlu0 %2586
        %2590 = vset.pattern.permute.xlu0 0
        %2591 = vperm.xlu0 %2590, %v2041
        %v2592 = vpop.permute.xlu0 %2591
        %2595 = vset.pattern.permute.xlu0 0
        %2596 = vperm.xlu0 %2595, %v2042
        %v2597 = vpop.permute.xlu0 %2596
        %2600 = vset.pattern.permute.xlu0 0
        %2601 = vperm.xlu0 %2600, %v2043
        %v2602 = vpop.permute.xlu0 %2601
        %2605 = vset.pattern.permute.xlu0 0
        %2606 = vperm.xlu0 %2605, %v2044
        %v2607 = vpop.permute.xlu0 %2606
        %2610 = vset.pattern.permute.xlu0 0
        %2611 = vperm.xlu0 %2610, %v2045
        %v2612 = vpop.permute.xlu0 %2611
        %2615 = vset.pattern.permute.xlu0 0
        %2616 = vperm.xlu0 %2615, %v2046
        %v2617 = vpop.permute.xlu0 %2616
        %2620 = vset.pattern.permute.xlu0 0
        %2621 = vperm.xlu0 %2620, %v2047
        %v2622 = vpop.permute.xlu0 %2621
        %2625 = vset.pattern.permute.xlu0 0
        %2626 = vperm.xlu0 %2625, %v2048
        %v2627 = vpop.permute.xlu0 %2626
        %2630 = vset.pattern.permute.xlu0 0
        %2631 = vperm.xlu0 %2630, %v2049
        %v2632 = vpop.permute.xlu0 %2631
        %2635 = vset.pattern.permute.xlu0 0
        %2636 = vperm.xlu0 %2635, %v2050
        %v2637 = vpop.permute.xlu0 %2636
        %2640 = vset.pattern.permute.xlu0 0
        %2641 = vperm.xlu0 %2640, %v2051
        %v2642 = vpop.permute.xlu0 %2641
        %2645 = vset.pattern.permute.xlu0 0
        %2646 = vperm.xlu0 %2645, %v2052
        %v2647 = vpop.permute.xlu0 %2646
        %2650 = vset.pattern.permute.xlu0 0
        %2651 = vperm.xlu0 %2650, %v2053
        %v2652 = vpop.permute.xlu0 %2651
        %2655 = vset.pattern.permute.xlu0 0
        %2656 = vperm.xlu0 %2655, %v2054
        %v2657 = vpop.permute.xlu0 %2656
        %2660 = vset.pattern.permute.xlu0 0
        %2661 = vperm.xlu0 %2660, %v2055
        %v2662 = vpop.permute.xlu0 %2661
        %2665 = vset.pattern.permute.xlu0 0
        %2666 = vperm.xlu0 %2665, %v2056
        %v2667 = vpop.permute.xlu0 %2666
        %2670 = vset.pattern.permute.xlu0 0
        %2671 = vperm.xlu0 %2670, %v2057
        %v2672 = vpop.permute.xlu0 %2671
        %2675 = vset.pattern.permute.xlu0 0
        %2676 = vperm.xlu0 %2675, %v2058
        %v2677 = vpop.permute.xlu0 %2676
        %2680 = vset.pattern.permute.xlu0 0
        %2681 = vperm.xlu0 %2680, %v2059
        %v2682 = vpop.permute.xlu0 %2681
        %2685 = vset.pattern.permute.xlu0 0
        %2686 = vperm.xlu0 %2685, %v2060
        %v2687 = vpop.permute.xlu0 %2686
        %2690 = vset.pattern.permute.xlu0 0
        %2691 = vperm.xlu0 %2690, %v2061
        %v2692 = vpop.permute.xlu0 %2691
        %2695 = vset.pattern.permute.xlu0 0
        %2696 = vperm.xlu0 %2695, %v2062
        %v2697 = vpop.permute.xlu0 %2696
        %2700 = vset.pattern.permute.xlu0 0
        %2701 = vperm.xlu0 %2700, %v2063
        %v2702 = vpop.permute.xlu0 %2701
        %v2704 = vmul.f32 %v1808, %v2067
        %v2705 = vmul.f32 %v1809, %v2072
        %v2706 = vmul.f32 %v1810, %v2077
        %v2707 = vmul.f32 %v1811, %v2082
        %v2708 = vmul.f32 %v1812, %v2087
        %v2709 = vmul.f32 %v1813, %v2092
        %v2710 = vmul.f32 %v1814, %v2097
        %v2711 = vmul.f32 %v1815, %v2102
        %v2712 = vmul.f32 %v1816, %v2107
        %v2713 = vmul.f32 %v1817, %v2112
        %v2714 = vmul.f32 %v1818, %v2117
        %v2715 = vmul.f32 %v1819, %v2122
        %v2716 = vmul.f32 %v1820, %v2127
        %v2717 = vmul.f32 %v1821, %v2132
        %v2718 = vmul.f32 %v1822, %v2137
        %v2719 = vmul.f32 %v1823, %v2142
        %v2720 = vmul.f32 %v1824, %v2147
        %v2721 = vmul.f32 %v1825, %v2152
        %v2722 = vmul.f32 %v1826, %v2157
        %v2723 = vmul.f32 %v1827, %v2162
        %v2724 = vmul.f32 %v1828, %v2167
        %v2725 = vmul.f32 %v1829, %v2172
        %v2726 = vmul.f32 %v1830, %v2177
        %v2727 = vmul.f32 %v1831, %v2182
        %v2728 = vmul.f32 %v1832, %v2187
        %v2729 = vmul.f32 %v1833, %v2192
        %v2730 = vmul.f32 %v1834, %v2197
        %v2731 = vmul.f32 %v1835, %v2202
        %v2732 = vmul.f32 %v1836, %v2207
        %v2733 = vmul.f32 %v1837, %v2212
        %v2734 = vmul.f32 %v1838, %v2217
        %v2735 = vmul.f32 %v1839, %v2222
        %v2736 = vmul.f32 %v1840, %v2227
        %v2737 = vmul.f32 %v1841, %v2232
        %v2738 = vmul.f32 %v1842, %v2237
        %v2739 = vmul.f32 %v1843, %v2242
        %v2740 = vmul.f32 %v1844, %v2247
        %v2741 = vmul.f32 %v1845, %v2252
        %v2742 = vmul.f32 %v1846, %v2257
        %v2743 = vmul.f32 %v1847, %v2262
        %v2744 = vmul.f32 %v1848, %v2267
        %v2745 = vmul.f32 %v1849, %v2272
        %v2746 = vmul.f32 %v1850, %v2277
        %v2747 = vmul.f32 %v1851, %v2282
        %v2748 = vmul.f32 %v1852, %v2287
        %v2749 = vmul.f32 %v1853, %v2292
        %v2750 = vmul.f32 %v1854, %v2297
        %v2751 = vmul.f32 %v1855, %v2302
        %v2752 = vmul.f32 %v1856, %v2307
        %v2753 = vmul.f32 %v1857, %v2312
        %v2754 = vmul.f32 %v1858, %v2317
        %v2755 = vmul.f32 %v1859, %v2322
        %v2756 = vmul.f32 %v1860, %v2327
        %v2757 = vmul.f32 %v1861, %v2332
        %v2758 = vmul.f32 %v1862, %v2337
        %v2759 = vmul.f32 %v1863, %v2342
        %v2760 = vmul.f32 %v1864, %v2347
        %v2761 = vmul.f32 %v1865, %v2352
        %v2762 = vmul.f32 %v1866, %v2357
        %v2763 = vmul.f32 %v1867, %v2362
        %v2764 = vmul.f32 %v1868, %v2367
        %v2765 = vmul.f32 %v1869, %v2372
        %v2766 = vmul.f32 %v1870, %v2377
        %v2767 = vmul.f32 %v1871, %v2382
        %v2768 = vmul.f32 %v1872, %v2387
        %v2769 = vmul.f32 %v1873, %v2392
        %v2770 = vmul.f32 %v1874, %v2397
        %v2771 = vmul.f32 %v1875, %v2402
        %v2772 = vmul.f32 %v1876, %v2407
        %v2773 = vmul.f32 %v1877, %v2412
        %v2774 = vmul.f32 %v1878, %v2417
        %v2775 = vmul.f32 %v1879, %v2422
        %v2776 = vmul.f32 %v1880, %v2427
        %v2777 = vmul.f32 %v1881, %v2432
        %v2778 = vmul.f32 %v1882, %v2437
        %v2779 = vmul.f32 %v1883, %v2442
        %v2780 = vmul.f32 %v1884, %v2447
        %v2781 = vmul.f32 %v1885, %v2452
        %v2782 = vmul.f32 %v1886, %v2457
        %v2783 = vmul.f32 %v1887, %v2462
        %v2784 = vmul.f32 %v1888, %v2467
        %v2785 = vmul.f32 %v1889, %v2472
        %v2786 = vmul.f32 %v1890, %v2477
        %v2787 = vmul.f32 %v1891, %v2482
        %v2788 = vmul.f32 %v1892, %v2487
        %v2789 = vmul.f32 %v1893, %v2492
        %v2790 = vmul.f32 %v1894, %v2497
        %v2791 = vmul.f32 %v1895, %v2502
        %v2792 = vmul.f32 %v1896, %v2507
        %v2793 = vmul.f32 %v1897, %v2512
        %v2794 = vmul.f32 %v1898, %v2517
        %v2795 = vmul.f32 %v1899, %v2522
        %v2796 = vmul.f32 %v1900, %v2527
        %v2797 = vmul.f32 %v1901, %v2532
        %v2798 = vmul.f32 %v1902, %v2537
        %v2799 = vmul.f32 %v1903, %v2542
        %v2800 = vmul.f32 %v1904, %v2547
        %v2801 = vmul.f32 %v1905, %v2552
        %v2802 = vmul.f32 %v1906, %v2557
        %v2803 = vmul.f32 %v1907, %v2562
        %v2804 = vmul.f32 %v1908, %v2567
        %v2805 = vmul.f32 %v1909, %v2572
        %v2806 = vmul.f32 %v1910, %v2577
        %v2807 = vmul.f32 %v1911, %v2582
        %v2808 = vmul.f32 %v1912, %v2587
        %v2809 = vmul.f32 %v1913, %v2592
        %v2810 = vmul.f32 %v1914, %v2597
        %v2811 = vmul.f32 %v1915, %v2602
        %v2812 = vmul.f32 %v1916, %v2607
        %v2813 = vmul.f32 %v1917, %v2612
        %v2814 = vmul.f32 %v1918, %v2617
        %v2815 = vmul.f32 %v1919, %v2622
        %v2816 = vmul.f32 %v1920, %v2627
        %v2817 = vmul.f32 %v1921, %v2632
        %v2818 = vmul.f32 %v1922, %v2637
        %v2819 = vmul.f32 %v1923, %v2642
        %v2820 = vmul.f32 %v1924, %v2647
        %v2821 = vmul.f32 %v1925, %v2652
        %v2822 = vmul.f32 %v1926, %v2657
        %v2823 = vmul.f32 %v1927, %v2662
        %v2824 = vmul.f32 %v1928, %v2667
        %v2825 = vmul.f32 %v1929, %v2672
        %v2826 = vmul.f32 %v1930, %v2677
        %v2827 = vmul.f32 %v1931, %v2682
        %v2828 = vmul.f32 %v1932, %v2687
        %v2829 = vmul.f32 %v1933, %v2692
        %v2830 = vmul.f32 %v1934, %v2697
        %v2831 = vmul.f32 %v1935, %v2702
        %v2832 = vpack.c.bf16 %v2705, %v2704
        %v2833 = vpack.c.bf16 %v2707, %v2706
        %v2834 = vpack.c.bf16 %v2709, %v2708
        %v2835 = vpack.c.bf16 %v2711, %v2710
        %v2836 = vpack.c.bf16 %v2713, %v2712
        %v2837 = vpack.c.bf16 %v2715, %v2714
        %v2838 = vpack.c.bf16 %v2717, %v2716
        %v2839 = vpack.c.bf16 %v2719, %v2718
        %v2840 = vpack.c.bf16 %v2721, %v2720
        %v2841 = vpack.c.bf16 %v2723, %v2722
        %v2842 = vpack.c.bf16 %v2725, %v2724
        %v2843 = vpack.c.bf16 %v2727, %v2726
        %v2844 = vpack.c.bf16 %v2729, %v2728
        %v2845 = vpack.c.bf16 %v2731, %v2730
        %v2846 = vpack.c.bf16 %v2733, %v2732
        %v2847 = vpack.c.bf16 %v2735, %v2734
        %v2848 = vpack.c.bf16 %v2737, %v2736
        %v2849 = vpack.c.bf16 %v2739, %v2738
        %v2850 = vpack.c.bf16 %v2741, %v2740
        %v2851 = vpack.c.bf16 %v2743, %v2742
        %v2852 = vpack.c.bf16 %v2745, %v2744
        %v2853 = vpack.c.bf16 %v2747, %v2746
        %v2854 = vpack.c.bf16 %v2749, %v2748
        %v2855 = vpack.c.bf16 %v2751, %v2750
        %v2856 = vpack.c.bf16 %v2753, %v2752
        %v2857 = vpack.c.bf16 %v2755, %v2754
        %v2858 = vpack.c.bf16 %v2757, %v2756
        %v2859 = vpack.c.bf16 %v2759, %v2758
        %v2860 = vpack.c.bf16 %v2761, %v2760
        %v2861 = vpack.c.bf16 %v2763, %v2762
        %v2862 = vpack.c.bf16 %v2765, %v2764
        %v2863 = vpack.c.bf16 %v2767, %v2766
        %v2864 = vpack.c.bf16 %v2769, %v2768
        %v2865 = vpack.c.bf16 %v2771, %v2770
        %v2866 = vpack.c.bf16 %v2773, %v2772
        %v2867 = vpack.c.bf16 %v2775, %v2774
        %v2868 = vpack.c.bf16 %v2777, %v2776
        %v2869 = vpack.c.bf16 %v2779, %v2778
        %v2870 = vpack.c.bf16 %v2781, %v2780
        %v2871 = vpack.c.bf16 %v2783, %v2782
        %v2872 = vpack.c.bf16 %v2785, %v2784
        %v2873 = vpack.c.bf16 %v2787, %v2786
        %v2874 = vpack.c.bf16 %v2789, %v2788
        %v2875 = vpack.c.bf16 %v2791, %v2790
        %v2876 = vpack.c.bf16 %v2793, %v2792
        %v2877 = vpack.c.bf16 %v2795, %v2794
        %v2878 = vpack.c.bf16 %v2797, %v2796
        %v2879 = vpack.c.bf16 %v2799, %v2798
        %v2880 = vpack.c.bf16 %v2801, %v2800
        %v2881 = vpack.c.bf16 %v2803, %v2802
        %v2882 = vpack.c.bf16 %v2805, %v2804
        %v2883 = vpack.c.bf16 %v2807, %v2806
        %v2884 = vpack.c.bf16 %v2809, %v2808
        %v2885 = vpack.c.bf16 %v2811, %v2810
        %v2886 = vpack.c.bf16 %v2813, %v2812
        %v2887 = vpack.c.bf16 %v2815, %v2814
        %v2888 = vpack.c.bf16 %v2817, %v2816
        %v2889 = vpack.c.bf16 %v2819, %v2818
        %v2890 = vpack.c.bf16 %v2821, %v2820
        %v2891 = vpack.c.bf16 %v2823, %v2822
        %v2892 = vpack.c.bf16 %v2825, %v2824
        %v2893 = vpack.c.bf16 %v2827, %v2826
        %v2894 = vpack.c.bf16 %v2829, %v2828
        %v2895 = vpack.c.bf16 %v2831, %v2830
        %v2960 = vunpack.c.l.b16 %v2832
        %v2961 = vunpack.c.h.b16 %v2832
        %v2962 = vunpack.c.l.b16 %v2833
        %v2963 = vunpack.c.h.b16 %v2833
        %v2964 = vunpack.c.l.b16 %v2834
        %v2965 = vunpack.c.h.b16 %v2834
        %v2966 = vunpack.c.l.b16 %v2835
        %v2967 = vunpack.c.h.b16 %v2835
        %v2968 = vunpack.c.l.b16 %v2836
        %v2969 = vunpack.c.h.b16 %v2836
        %v2970 = vunpack.c.l.b16 %v2837
        %v2971 = vunpack.c.h.b16 %v2837
        %v2972 = vunpack.c.l.b16 %v2838
        %v2973 = vunpack.c.h.b16 %v2838
        %v2974 = vunpack.c.l.b16 %v2839
        %v2975 = vunpack.c.h.b16 %v2839
        %v2976 = vunpack.c.l.b16 %v2840
        %v2977 = vunpack.c.h.b16 %v2840
        %v2978 = vunpack.c.l.b16 %v2841
        %v2979 = vunpack.c.h.b16 %v2841
        %v2980 = vunpack.c.l.b16 %v2842
        %v2981 = vunpack.c.h.b16 %v2842
        %v2982 = vunpack.c.l.b16 %v2843
        %v2983 = vunpack.c.h.b16 %v2843
        %v2984 = vunpack.c.l.b16 %v2844
        %v2985 = vunpack.c.h.b16 %v2844
        %v2986 = vunpack.c.l.b16 %v2845
        %v2987 = vunpack.c.h.b16 %v2845
        %v2988 = vunpack.c.l.b16 %v2846
        %v2989 = vunpack.c.h.b16 %v2846
        %v2990 = vunpack.c.l.b16 %v2847
        %v2991 = vunpack.c.h.b16 %v2847
        %v2992 = vunpack.c.l.b16 %v2848
        %v2993 = vunpack.c.h.b16 %v2848
        %v2994 = vunpack.c.l.b16 %v2849
        %v2995 = vunpack.c.h.b16 %v2849
        %v2996 = vunpack.c.l.b16 %v2850
        %v2997 = vunpack.c.h.b16 %v2850
        %v2998 = vunpack.c.l.b16 %v2851
        %v2999 = vunpack.c.h.b16 %v2851
        %v3000 = vunpack.c.l.b16 %v2852
        %v3001 = vunpack.c.h.b16 %v2852
        %v3002 = vunpack.c.l.b16 %v2853
        %v3003 = vunpack.c.h.b16 %v2853
        %v3004 = vunpack.c.l.b16 %v2854
        %v3005 = vunpack.c.h.b16 %v2854
        %v3006 = vunpack.c.l.b16 %v2855
        %v3007 = vunpack.c.h.b16 %v2855
        %v3008 = vunpack.c.l.b16 %v2856
        %v3009 = vunpack.c.h.b16 %v2856
        %v3010 = vunpack.c.l.b16 %v2857
        %v3011 = vunpack.c.h.b16 %v2857
        %v3012 = vunpack.c.l.b16 %v2858
        %v3013 = vunpack.c.h.b16 %v2858
        %v3014 = vunpack.c.l.b16 %v2859
        %v3015 = vunpack.c.h.b16 %v2859
        %v3016 = vunpack.c.l.b16 %v2860
        %v3017 = vunpack.c.h.b16 %v2860
        %v3018 = vunpack.c.l.b16 %v2861
        %v3019 = vunpack.c.h.b16 %v2861
        %v3020 = vunpack.c.l.b16 %v2862
        %v3021 = vunpack.c.h.b16 %v2862
        %v3022 = vunpack.c.l.b16 %v2863
        %v3023 = vunpack.c.h.b16 %v2863
        %v3024 = vunpack.c.l.b16 %v2864
        %v3025 = vunpack.c.h.b16 %v2864
        %v3026 = vunpack.c.l.b16 %v2865
        %v3027 = vunpack.c.h.b16 %v2865
        %v3028 = vunpack.c.l.b16 %v2866
        %v3029 = vunpack.c.h.b16 %v2866
        %v3030 = vunpack.c.l.b16 %v2867
        %v3031 = vunpack.c.h.b16 %v2867
        %v3032 = vunpack.c.l.b16 %v2868
        %v3033 = vunpack.c.h.b16 %v2868
        %v3034 = vunpack.c.l.b16 %v2869
        %v3035 = vunpack.c.h.b16 %v2869
        %v3036 = vunpack.c.l.b16 %v2870
        %v3037 = vunpack.c.h.b16 %v2870
        %v3038 = vunpack.c.l.b16 %v2871
        %v3039 = vunpack.c.h.b16 %v2871
        %v3040 = vunpack.c.l.b16 %v2872
        %v3041 = vunpack.c.h.b16 %v2872
        %v3042 = vunpack.c.l.b16 %v2873
        %v3043 = vunpack.c.h.b16 %v2873
        %v3044 = vunpack.c.l.b16 %v2874
        %v3045 = vunpack.c.h.b16 %v2874
        %v3046 = vunpack.c.l.b16 %v2875
        %v3047 = vunpack.c.h.b16 %v2875
        %v3048 = vunpack.c.l.b16 %v2876
        %v3049 = vunpack.c.h.b16 %v2876
        %v3050 = vunpack.c.l.b16 %v2877
        %v3051 = vunpack.c.h.b16 %v2877
        %v3052 = vunpack.c.l.b16 %v2878
        %v3053 = vunpack.c.h.b16 %v2878
        %v3054 = vunpack.c.l.b16 %v2879
        %v3055 = vunpack.c.h.b16 %v2879
        %v3056 = vunpack.c.l.b16 %v2880
        %v3057 = vunpack.c.h.b16 %v2880
        %v3058 = vunpack.c.l.b16 %v2881
        %v3059 = vunpack.c.h.b16 %v2881
        %v3060 = vunpack.c.l.b16 %v2882
        %v3061 = vunpack.c.h.b16 %v2882
        %v3062 = vunpack.c.l.b16 %v2883
        %v3063 = vunpack.c.h.b16 %v2883
        %v3064 = vunpack.c.l.b16 %v2884
        %v3065 = vunpack.c.h.b16 %v2884
        %v3066 = vunpack.c.l.b16 %v2885
        %v3067 = vunpack.c.h.b16 %v2885
        %v3068 = vunpack.c.l.b16 %v2886
        %v3069 = vunpack.c.h.b16 %v2886
        %v3070 = vunpack.c.l.b16 %v2887
        %v3071 = vunpack.c.h.b16 %v2887
        %v3072 = vunpack.c.l.b16 %v2888
        %v3073 = vunpack.c.h.b16 %v2888
        %v3074 = vunpack.c.l.b16 %v2889
        %v3075 = vunpack.c.h.b16 %v2889
        %v3076 = vunpack.c.l.b16 %v2890
        %v3077 = vunpack.c.h.b16 %v2890
        %v3078 = vunpack.c.l.b16 %v2891
        %v3079 = vunpack.c.h.b16 %v2891
        %v3080 = vunpack.c.l.b16 %v2892
        %v3081 = vunpack.c.h.b16 %v2892
        %v3082 = vunpack.c.l.b16 %v2893
        %v3083 = vunpack.c.h.b16 %v2893
        %v3084 = vunpack.c.l.b16 %v2894
        %v3085 = vunpack.c.h.b16 %v2894
        %v3086 = vunpack.c.l.b16 %v2895
        %v3087 = vunpack.c.h.b16 %v2895
        %v3088 = vpack.c.b16 %v2960, %v2960
        %v3089 = vpack.c.b16 %v2961, %v2961
        %v3090 = vpack.c.b16 %v2962, %v2962
        %v3091 = vpack.c.b16 %v2963, %v2963
        %v3092 = vpack.c.b16 %v2964, %v2964
        %v3093 = vpack.c.b16 %v2965, %v2965
        %v3094 = vpack.c.b16 %v2966, %v2966
        %v3095 = vpack.c.b16 %v2967, %v2967
        %v3096 = vpack.c.b16 %v2968, %v2968
        %v3097 = vpack.c.b16 %v2969, %v2969
        %v3098 = vpack.c.b16 %v2970, %v2970
        %v3099 = vpack.c.b16 %v2971, %v2971
        %v3100 = vpack.c.b16 %v2972, %v2972
        %v3101 = vpack.c.b16 %v2973, %v2973
        %v3102 = vpack.c.b16 %v2974, %v2974
        %v3103 = vpack.c.b16 %v2975, %v2975
        %v3104 = vpack.c.b16 %v2976, %v2976
        %v3105 = vpack.c.b16 %v2977, %v2977
        %v3106 = vpack.c.b16 %v2978, %v2978
        %v3107 = vpack.c.b16 %v2979, %v2979
        %v3108 = vpack.c.b16 %v2980, %v2980
        %v3109 = vpack.c.b16 %v2981, %v2981
        %v3110 = vpack.c.b16 %v2982, %v2982
        %v3111 = vpack.c.b16 %v2983, %v2983
        %v3112 = vpack.c.b16 %v2984, %v2984
        %v3113 = vpack.c.b16 %v2985, %v2985
        %v3114 = vpack.c.b16 %v2986, %v2986
        %v3115 = vpack.c.b16 %v2987, %v2987
        %v3116 = vpack.c.b16 %v2988, %v2988
        %v3117 = vpack.c.b16 %v2989, %v2989
        %v3118 = vpack.c.b16 %v2990, %v2990
        %v3119 = vpack.c.b16 %v2991, %v2991
        %v3120 = vpack.c.b16 %v2992, %v2992
        %v3121 = vpack.c.b16 %v2993, %v2993
        %v3122 = vpack.c.b16 %v2994, %v2994
        %v3123 = vpack.c.b16 %v2995, %v2995
        %v3124 = vpack.c.b16 %v2996, %v2996
        %v3125 = vpack.c.b16 %v2997, %v2997
        %v3126 = vpack.c.b16 %v2998, %v2998
        %v3127 = vpack.c.b16 %v2999, %v2999
        %v3128 = vpack.c.b16 %v3000, %v3000
        %v3129 = vpack.c.b16 %v3001, %v3001
        %v3130 = vpack.c.b16 %v3002, %v3002
        %v3131 = vpack.c.b16 %v3003, %v3003
        %v3132 = vpack.c.b16 %v3004, %v3004
        %v3133 = vpack.c.b16 %v3005, %v3005
        %v3134 = vpack.c.b16 %v3006, %v3006
        %v3135 = vpack.c.b16 %v3007, %v3007
        %v3136 = vpack.c.b16 %v3008, %v3008
        %v3137 = vpack.c.b16 %v3009, %v3009
        %v3138 = vpack.c.b16 %v3010, %v3010
        %v3139 = vpack.c.b16 %v3011, %v3011
        %v3140 = vpack.c.b16 %v3012, %v3012
        %v3141 = vpack.c.b16 %v3013, %v3013
        %v3142 = vpack.c.b16 %v3014, %v3014
        %v3143 = vpack.c.b16 %v3015, %v3015
        %v3144 = vpack.c.b16 %v3016, %v3016
        %v3145 = vpack.c.b16 %v3017, %v3017
        %v3146 = vpack.c.b16 %v3018, %v3018
        %v3147 = vpack.c.b16 %v3019, %v3019
        %v3148 = vpack.c.b16 %v3020, %v3020
        %v3149 = vpack.c.b16 %v3021, %v3021
        %v3150 = vpack.c.b16 %v3022, %v3022
        %v3151 = vpack.c.b16 %v3023, %v3023
        %v3152 = vpack.c.b16 %v3024, %v3024
        %v3153 = vpack.c.b16 %v3025, %v3025
        %v3154 = vpack.c.b16 %v3026, %v3026
        %v3155 = vpack.c.b16 %v3027, %v3027
        %v3156 = vpack.c.b16 %v3028, %v3028
        %v3157 = vpack.c.b16 %v3029, %v3029
        %v3158 = vpack.c.b16 %v3030, %v3030
        %v3159 = vpack.c.b16 %v3031, %v3031
        %v3160 = vpack.c.b16 %v3032, %v3032
        %v3161 = vpack.c.b16 %v3033, %v3033
        %v3162 = vpack.c.b16 %v3034, %v3034
        %v3163 = vpack.c.b16 %v3035, %v3035
        %v3164 = vpack.c.b16 %v3036, %v3036
        %v3165 = vpack.c.b16 %v3037, %v3037
        %v3166 = vpack.c.b16 %v3038, %v3038
        %v3167 = vpack.c.b16 %v3039, %v3039
        %v3168 = vpack.c.b16 %v3040, %v3040
        %v3169 = vpack.c.b16 %v3041, %v3041
        %v3170 = vpack.c.b16 %v3042, %v3042
        %v3171 = vpack.c.b16 %v3043, %v3043
        %v3172 = vpack.c.b16 %v3044, %v3044
        %v3173 = vpack.c.b16 %v3045, %v3045
        %v3174 = vpack.c.b16 %v3046, %v3046
        %v3175 = vpack.c.b16 %v3047, %v3047
        %v3176 = vpack.c.b16 %v3048, %v3048
        %v3177 = vpack.c.b16 %v3049, %v3049
        %v3178 = vpack.c.b16 %v3050, %v3050
        %v3179 = vpack.c.b16 %v3051, %v3051
        %v3180 = vpack.c.b16 %v3052, %v3052
        %v3181 = vpack.c.b16 %v3053, %v3053
        %v3182 = vpack.c.b16 %v3054, %v3054
        %v3183 = vpack.c.b16 %v3055, %v3055
        %v3184 = vpack.c.b16 %v3056, %v3056
        %v3185 = vpack.c.b16 %v3057, %v3057
        %v3186 = vpack.c.b16 %v3058, %v3058
        %v3187 = vpack.c.b16 %v3059, %v3059
        %v3188 = vpack.c.b16 %v3060, %v3060
        %v3189 = vpack.c.b16 %v3061, %v3061
        %v3190 = vpack.c.b16 %v3062, %v3062
        %v3191 = vpack.c.b16 %v3063, %v3063
        %v3192 = vpack.c.b16 %v3064, %v3064
        %v3193 = vpack.c.b16 %v3065, %v3065
        %v3194 = vpack.c.b16 %v3066, %v3066
        %v3195 = vpack.c.b16 %v3067, %v3067
        %v3196 = vpack.c.b16 %v3068, %v3068
        %v3197 = vpack.c.b16 %v3069, %v3069
        %v3198 = vpack.c.b16 %v3070, %v3070
        %v3199 = vpack.c.b16 %v3071, %v3071
        %v3200 = vpack.c.b16 %v3072, %v3072
        %v3201 = vpack.c.b16 %v3073, %v3073
        %v3202 = vpack.c.b16 %v3074, %v3074
        %v3203 = vpack.c.b16 %v3075, %v3075
        %v3204 = vpack.c.b16 %v3076, %v3076
        %v3205 = vpack.c.b16 %v3077, %v3077
        %v3206 = vpack.c.b16 %v3078, %v3078
        %v3207 = vpack.c.b16 %v3079, %v3079
        %v3208 = vpack.c.b16 %v3080, %v3080
        %v3209 = vpack.c.b16 %v3081, %v3081
        %v3210 = vpack.c.b16 %v3082, %v3082
        %v3211 = vpack.c.b16 %v3083, %v3083
        %v3212 = vpack.c.b16 %v3084, %v3084
        %v3213 = vpack.c.b16 %v3085, %v3085
        %v3214 = vpack.c.b16 %v3086, %v3086
        %v3215 = vpack.c.b16 %v3087, %v3087
        %3344 = vst [vmem:[%s258] sm:$0xf] %v3088
        %3345 = vst [vmem:[%s258 + $0x4] sm:$0xf] %v3089
        %3346 = vst [vmem:[%s258 + $0x8] sm:$0xf] %v3090
        %3347 = vst [vmem:[%s258 + $0xc] sm:$0xf] %v3091
        %3348 = vst [vmem:[%s258 + $0x10] sm:$0xf] %v3092
        %3349 = vst [vmem:[%s258 + $0x14] sm:$0xf] %v3093
        %3350 = vst [vmem:[%s258 + $0x18] sm:$0xf] %v3094
        %3351 = vst [vmem:[%s258 + $0x1c] sm:$0xf] %v3095
        %3352 = vst [vmem:[%s258 + $0x20] sm:$0xf] %v3096
        %3353 = vst [vmem:[%s258 + $0x24] sm:$0xf] %v3097
        %3354 = vst [vmem:[%s258 + $0x28] sm:$0xf] %v3098
        %3355 = vst [vmem:[%s258 + $0x2c] sm:$0xf] %v3099
        %3356 = vst [vmem:[%s258 + $0x30] sm:$0xf] %v3100
        %3357 = vst [vmem:[%s258 + $0x34] sm:$0xf] %v3101
        %3358 = vst [vmem:[%s258 + $0x38] sm:$0xf] %v3102
        %3359 = vst [vmem:[%s258 + $0x3c] sm:$0xf] %v3103
        %3360 = vst [vmem:[%s258 + $0x40] sm:$0xf] %v3104
        %3361 = vst [vmem:[%s258 + $0x44] sm:$0xf] %v3105
        %3362 = vst [vmem:[%s258 + $0x48] sm:$0xf] %v3106
        %3363 = vst [vmem:[%s258 + $0x4c] sm:$0xf] %v3107
        %3364 = vst [vmem:[%s258 + $0x50] sm:$0xf] %v3108
        %3365 = vst [vmem:[%s258 + $0x54] sm:$0xf] %v3109
        %3366 = vst [vmem:[%s258 + $0x58] sm:$0xf] %v3110
        %3367 = vst [vmem:[%s258 + $0x5c] sm:$0xf] %v3111
        %3368 = vst [vmem:[%s258 + $0x60] sm:$0xf] %v3112
        %3369 = vst [vmem:[%s258 + $0x64] sm:$0xf] %v3113
        %3370 = vst [vmem:[%s258 + $0x68] sm:$0xf] %v3114
        %3371 = vst [vmem:[%s258 + $0x6c] sm:$0xf] %v3115
        %3372 = vst [vmem:[%s258 + $0x70] sm:$0xf] %v3116
        %3373 = vst [vmem:[%s258 + $0x74] sm:$0xf] %v3117
        %3374 = vst [vmem:[%s258 + $0x78] sm:$0xf] %v3118
        %3375 = vst [vmem:[%s258 + $0x7c] sm:$0xf] %v3119
        %3376 = vst [vmem:[%s258 + $0x80] sm:$0xf] %v3120
        %3377 = vst [vmem:[%s258 + $0x84] sm:$0xf] %v3121
        %3378 = vst [vmem:[%s258 + $0x88] sm:$0xf] %v3122
        %3379 = vst [vmem:[%s258 + $0x8c] sm:$0xf] %v3123
        %3380 = vst [vmem:[%s258 + $0x90] sm:$0xf] %v3124
        %3381 = vst [vmem:[%s258 + $0x94] sm:$0xf] %v3125
        %3382 = vst [vmem:[%s258 + $0x98] sm:$0xf] %v3126
        %3383 = vst [vmem:[%s258 + $0x9c] sm:$0xf] %v3127
        %3384 = vst [vmem:[%s258 + $0xa0] sm:$0xf] %v3128
        %3385 = vst [vmem:[%s258 + $0xa4] sm:$0xf] %v3129
        %3386 = vst [vmem:[%s258 + $0xa8] sm:$0xf] %v3130
        %3387 = vst [vmem:[%s258 + $0xac] sm:$0xf] %v3131
        %3388 = vst [vmem:[%s258 + $0xb0] sm:$0xf] %v3132
        %3389 = vst [vmem:[%s258 + $0xb4] sm:$0xf] %v3133
        %3390 = vst [vmem:[%s258 + $0xb8] sm:$0xf] %v3134
        %3391 = vst [vmem:[%s258 + $0xbc] sm:$0xf] %v3135
        %3392 = vst [vmem:[%s258 + $0xc0] sm:$0xf] %v3136
        %3393 = vst [vmem:[%s258 + $0xc4] sm:$0xf] %v3137
        %3394 = vst [vmem:[%s258 + $0xc8] sm:$0xf] %v3138
        %3395 = vst [vmem:[%s258 + $0xcc] sm:$0xf] %v3139
        %3396 = vst [vmem:[%s258 + $0xd0] sm:$0xf] %v3140
        %3397 = vst [vmem:[%s258 + $0xd4] sm:$0xf] %v3141
        %3398 = vst [vmem:[%s258 + $0xd8] sm:$0xf] %v3142
        %3399 = vst [vmem:[%s258 + $0xdc] sm:$0xf] %v3143
        %3400 = vst [vmem:[%s258 + $0xe0] sm:$0xf] %v3144
        %3401 = vst [vmem:[%s258 + $0xe4] sm:$0xf] %v3145
        %3402 = vst [vmem:[%s258 + $0xe8] sm:$0xf] %v3146
        %3403 = vst [vmem:[%s258 + $0xec] sm:$0xf] %v3147
        %3404 = vst [vmem:[%s258 + $0xf0] sm:$0xf] %v3148
        %3405 = vst [vmem:[%s258 + $0xf4] sm:$0xf] %v3149
        %3406 = vst [vmem:[%s258 + $0xf8] sm:$0xf] %v3150
        %3407 = vst [vmem:[%s258 + $0xfc] sm:$0xf] %v3151
        %3408 = vst [vmem:[%s258 + $0x100] sm:$0xf] %v3152
        %3409 = vst [vmem:[%s258 + $0x104] sm:$0xf] %v3153
        %3410 = vst [vmem:[%s258 + $0x108] sm:$0xf] %v3154
        %3411 = vst [vmem:[%s258 + $0x10c] sm:$0xf] %v3155
        %3412 = vst [vmem:[%s258 + $0x110] sm:$0xf] %v3156
        %3413 = vst [vmem:[%s258 + $0x114] sm:$0xf] %v3157
        %3414 = vst [vmem:[%s258 + $0x118] sm:$0xf] %v3158
        %3415 = vst [vmem:[%s258 + $0x11c] sm:$0xf] %v3159
        %3416 = vst [vmem:[%s258 + $0x120] sm:$0xf] %v3160
        %3417 = vst [vmem:[%s258 + $0x124] sm:$0xf] %v3161
        %3418 = vst [vmem:[%s258 + $0x128] sm:$0xf] %v3162
        %3419 = vst [vmem:[%s258 + $0x12c] sm:$0xf] %v3163
        %3420 = vst [vmem:[%s258 + $0x130] sm:$0xf] %v3164
        %3421 = vst [vmem:[%s258 + $0x134] sm:$0xf] %v3165
        %3422 = vst [vmem:[%s258 + $0x138] sm:$0xf] %v3166
        %3423 = vst [vmem:[%s258 + $0x13c] sm:$0xf] %v3167
        %3424 = vst [vmem:[%s258 + $0x140] sm:$0xf] %v3168
        %3425 = vst [vmem:[%s258 + $0x144] sm:$0xf] %v3169
        %3426 = vst [vmem:[%s258 + $0x148] sm:$0xf] %v3170
        %3427 = vst [vmem:[%s258 + $0x14c] sm:$0xf] %v3171
        %3428 = vst [vmem:[%s258 + $0x150] sm:$0xf] %v3172
        %3429 = vst [vmem:[%s258 + $0x154] sm:$0xf] %v3173
        %3430 = vst [vmem:[%s258 + $0x158] sm:$0xf] %v3174
        %3431 = vst [vmem:[%s258 + $0x15c] sm:$0xf] %v3175
        %3432 = vst [vmem:[%s258 + $0x160] sm:$0xf] %v3176
        %3433 = vst [vmem:[%s258 + $0x164] sm:$0xf] %v3177
        %3434 = vst [vmem:[%s258 + $0x168] sm:$0xf] %v3178
        %3435 = vst [vmem:[%s258 + $0x16c] sm:$0xf] %v3179
        %3436 = vst [vmem:[%s258 + $0x170] sm:$0xf] %v3180
        %3437 = vst [vmem:[%s258 + $0x174] sm:$0xf] %v3181
        %3438 = vst [vmem:[%s258 + $0x178] sm:$0xf] %v3182
        %3439 = vst [vmem:[%s258 + $0x17c] sm:$0xf] %v3183
        %3440 = vst [vmem:[%s258 + $0x180] sm:$0xf] %v3184
        %3441 = vst [vmem:[%s258 + $0x184] sm:$0xf] %v3185
        %3442 = vst [vmem:[%s258 + $0x188] sm:$0xf] %v3186
        %3443 = vst [vmem:[%s258 + $0x18c] sm:$0xf] %v3187
        %3444 = vst [vmem:[%s258 + $0x190] sm:$0xf] %v3188
        %3445 = vst [vmem:[%s258 + $0x194] sm:$0xf] %v3189
        %3446 = vst [vmem:[%s258 + $0x198] sm:$0xf] %v3190
        %3447 = vst [vmem:[%s258 + $0x19c] sm:$0xf] %v3191
        %3448 = vst [vmem:[%s258 + $0x1a0] sm:$0xf] %v3192
        %3449 = vst [vmem:[%s258 + $0x1a4] sm:$0xf] %v3193
        %3450 = vst [vmem:[%s258 + $0x1a8] sm:$0xf] %v3194
        %3451 = vst [vmem:[%s258 + $0x1ac] sm:$0xf] %v3195
        %3452 = vst [vmem:[%s258 + $0x1b0] sm:$0xf] %v3196
        %3453 = vst [vmem:[%s258 + $0x1b4] sm:$0xf] %v3197
        %3454 = vst [vmem:[%s258 + $0x1b8] sm:$0xf] %v3198
        %3455 = vst [vmem:[%s258 + $0x1bc] sm:$0xf] %v3199
        %3456 = vst [vmem:[%s258 + $0x1c0] sm:$0xf] %v3200
        %3457 = vst [vmem:[%s258 + $0x1c4] sm:$0xf] %v3201
        %3458 = vst [vmem:[%s258 + $0x1c8] sm:$0xf] %v3202
        %3459 = vst [vmem:[%s258 + $0x1cc] sm:$0xf] %v3203
        %3460 = vst [vmem:[%s258 + $0x1d0] sm:$0xf] %v3204
        %3461 = vst [vmem:[%s258 + $0x1d4] sm:$0xf] %v3205
        %3462 = vst [vmem:[%s258 + $0x1d8] sm:$0xf] %v3206
        %3463 = vst [vmem:[%s258 + $0x1dc] sm:$0xf] %v3207
        %3464 = vst [vmem:[%s258 + $0x1e0] sm:$0xf] %v3208
        %3465 = vst [vmem:[%s258 + $0x1e4] sm:$0xf] %v3209
        %3466 = vst [vmem:[%s258 + $0x1e8] sm:$0xf] %v3210
        %3467 = vst [vmem:[%s258 + $0x1ec] sm:$0xf] %v3211
        %3468 = vst [vmem:[%s258 + $0x1f0] sm:$0xf] %v3212
        %3469 = vst [vmem:[%s258 + $0x1f4] sm:$0xf] %v3213
        %3470 = vst [vmem:[%s258 + $0x1f8] sm:$0xf] %v3214
        %3471 = vst [vmem:[%s258 + $0x1fc] sm:$0xf] %v3215
        %s3472 = sand.u32 %s142, 1
        %s3473 = scalar_lea.sflag [#allocation3], %s3472
        %s3474 = sand.u32 %s142, 1
        %s3475 = smul.addr %s3474, 512
        %s3476 = scalar_lea.vmem [#allocation2], %s3475
        // Predicated region
        $region41: #{tpu_custom_call.1} parent=39 // pred_check
          %p3477 = pneg %p152
        $region42: #{tpu_custom_call.1} parent=39 // pred_check_branch
          %3479 = sbr.rel (%p3477) target = $region44
        $region43: #{tpu_custom_call.1} parent=39 // pred_region
          %s3480 = smul.u32 128, %s19
          %s3481 = ssub.s32 1600, %s3480
          %p3482 = scmp.lt.s32.totalorder %s3481, 128
          %s3483 = scalar_select %p3482, %s3481, 128
          %s3484 = smul.u32 64, %s3483
          %s3486 = ssub.s32 8192, %s3484
          %3487 = vsyncadd %s3473, %s3486
          %p3488 = scmp.ne.s32.totalorder 0, %s3484
          %s3489 = smul.addr %s3480, 64
          %s3490 = scalar_lea.hbm %s5, %s3489
          %s3491 = smul.u32 4, %s3483
          %s3492 = sshll.u32 %s3476, 4
          %s3493 = int_to_ptr.vmem [resolvable:$true] %s3492
          %s3494 = sshll.u32 %s3491, 4
          %3498 = dma.vmem_to_hbm [thread:$0]  (%p3488), %s3493, %s3494, %s3490, %s3473, 64, 64, 4
        $region44: #{tpu_custom_call.1} parent=39 // pred_fallthru
          _
      $region40: #{tpu_custom_call.1} parent=5 // pred_fallthru
        _
      %p3499 = scmp.le.s32.totalorder 2, %s14
      // Predicated region
      $region45: #{tpu_custom_call.1} parent=5 // pred_check
        %p3500 = pneg %p3499
      $region46: #{tpu_custom_call.1} parent=5 // pred_check_branch
        %3502 = sbr.rel (%p3500) target = $region48
      $region47: #{tpu_custom_call.1} parent=5 // pred_region
        %s3503 = ssub.s32 %s14, 2
        // Predicated region
        $region49: #{tpu_custom_call.1} parent=47 // pred_check
          %p3504 = pneg %p158
        $region50: #{tpu_custom_call.1} parent=47 // pred_check_branch
          %3506 = sbr.rel (%p3504) target = $region52
        $region51: #{tpu_custom_call.1} parent=47 // pred_region
          %s3507 = sand.u32 %s143, 1
          %s3508 = scalar_lea.sflag [#allocation3], %s3507
          %s3509 = sand.u32 %s143, 1
          %s3510 = smul.addr %s3509, 512
          %s3511 = scalar_lea.vmem [#allocation2], %s3510
          %3512 = dma.done %s3508, 8192
        $region52: #{tpu_custom_call.1} parent=47 // pred_fallthru
          _
      $region48: #{tpu_custom_call.1} parent=5 // pred_fallthru
        _
    $region6: #{tpu_custom_call.1} parent=1 // loop_footer
      %s18 = sadd.s32 1, %s14
    $region7: #{tpu_custom_call.1} parent=1 // loop_footer_branch
      %13 = sbr.rel target = $region3
    $region8: #{tpu_custom_call.1} parent=1 // loop_exit
      _
    %3513 = vsyncpa [#allocation3], 1
    %s3514 = scalar_lea.sflag [#allocation3], 1
    %3515 = vsyncpa %s3514, 1

</llo_original>
